<compile_context>
chip_gen: v6e
topology: v6e:2x2x1
jax: 0.10.0
libtpu: 0.0.40
codegen_flags: <defaults>
</compile_context>

<pallas_src>
import functools

import jax
import jax.numpy as jnp
import numpy as np
from jax.experimental import pallas as pl
from jax.experimental.pallas import tpu as pltpu


def _round_up(x, m):
    return (x + m - 1) // m * m


# ------------------------------ fused VD kernel -------------------------------
def _vd_fused_kernel(zp_ref, w1_ref, b1_ref, w2_ref, b2_ref, w3_ref, b3_ref,
                     mask_ref, o_ref, pad0_ref, pad1_ref, x1_ref, x2_ref,
                     *, PP, M, offsets, C1, HID):
    # zp_ref  : (1, Cin, PP)    bf16  zero-padded, flattened (Hp*Wp -> PP lanes) latent
    # w1_ref  : (C1, Cin)       bf16  1x1 weight, out-channels padded to 8 (pad rows 0)
    # b1_ref  : (C1, 1)         f32
    # w2_ref  : (HID, 9*C1)     bf16  conv_in weight as (Cout, tap*C1 + cin)
    # b2_ref  : (HID, 1)        f32
    # w3_ref  : (C_OUT_P, 9*HID) bf16 conv_out weight, out-channels padded to 8
    # b3_ref  : (C_OUT_P, 1)    f32
    # mask_ref: (1, PP)         f32   1.0 at interior flat positions, 0.0 on halo/lane pad
    # o_ref   : (1, C_OUT_P, PP) f32
    # pad0/1  : bf16 VMEM scratch (C, M + PP + M); never zeroed (see header comment)
    # x1/x2   : bf16 VMEM im2col scratch; taps streamed in to bound vreg pressure
    mask = mask_ref[...]                              # (1, PP) f32
    keep = mask != 0.0                                # interior selector

    # ---- post_quant_conv (1x1): (C1, Cin) @ (Cin, PP) ----------------------------
    y0 = jnp.dot(w1_ref[...], zp_ref[0], preferred_element_type=jnp.float32)
    y0 = y0 + b1_ref[...] * mask                      # bias only on interior -> halo stays 0
    pad0_ref[:, M:M + PP] = y0.astype(jnp.bfloat16)

    # ---- decoder.conv_in (3x3, pad=1) + SiLU ------------------------------------
    # im2col: 9 lane-shifted views streamed straight into VMEM scratch (no big concat).
    for t, off in enumerate(offsets):
        x1_ref[t * C1:(t + 1) * C1, :] = pad0_ref[:, M + off:M + off + PP]
    a1 = jnp.dot(w2_ref[...], x1_ref[...],
                 preferred_element_type=jnp.float32) + b2_ref[...]        # (HID, PP)
    y1 = jnp.where(keep, a1 * jax.nn.sigmoid(a1), 0.0)  # SiLU; exact zeros on halo/pad
    pad1_ref[:, M:M + PP] = y1.astype(jnp.bfloat16)

    # ---- decoder.conv_out (3x3, pad=1) ------------------------------------------
    for t, off in enumerate(offsets):
        x2_ref[t * HID:(t + 1) * HID, :] = pad1_ref[:, M + off:M + off + PP]
    y2 = jnp.dot(w3_ref[...], x2_ref[...],
                 preferred_element_type=jnp.float32) + b3_ref[...]        # (C_OUT_P, PP)

    o_ref[0] = y2   # halo / lane-pad columns are garbage; wrapper strips them


# --------------------------------- VD forward ---------------------------------
@functools.partial(jax.jit, static_argnames=("c_out",))
def vd_forward(z_nchw, params, *, c_out):
    """z (NCHW) -> post_quant_conv -> decoder(conv_in -> SiLU -> conv_out), NCHW out."""
    N, Cin, H, W = z_nchw.shape
    Hp, Wp = H + 2, W + 2
    P = Hp * Wp                      # zero-padded flat spatial size
    PP = _round_up(P, 128)           # lane-dense flat spatial axis
    M = _round_up(Wp + 1, 128)       # left/right tap margins (valid for any W)

    w1, b1 = params["w1"], params["b1"]
    w2, b2 = params["w2"], params["b2"]
    w3, b3 = params["w3"], params["b3"]
    C1 = w1.shape[0]                 # 1x1 out-channels padded to 8
    HID = w2.shape[0]
    C_OUT_P = w3.shape[0]            # conv_out channels padded to 8

    # Zero-padded, flattened, lane-padded bf16 latent: (N, Cin, PP).
    zp = jnp.pad(z_nchw.astype(jnp.bfloat16), ((0, 0), (0, 0), (1, 1), (1, 1)))
    zp = zp.reshape(N, Cin, P)
    zp = jnp.pad(zp, ((0, 0), (0, 0), (0, PP - P)))
    # Interior mask in the same flat layout.
    mask = jnp.pad(jnp.ones((H, W), jnp.float32), ((1, 1), (1, 1))).reshape(1, P)
    mask = jnp.pad(mask, ((0, 0), (0, PP - P)))

    # Flat-index offset of each 3x3 tap in the padded image (kh-major, kw-minor).
    offsets = tuple((kh - 1) * Wp + (kw - 1) for kh in range(3) for kw in range(3))

    kernel = functools.partial(_vd_fused_kernel, PP=PP, M=M, offsets=offsets,
                               C1=C1, HID=HID)
    out_flat = pl.pallas_call(
        kernel,
        out_shape=jax.ShapeDtypeStruct((N, C_OUT_P, PP), jnp.float32),
        grid=(N,),
        in_specs=[
            pl.BlockSpec((1, Cin, PP), lambda n: (n, 0, 0)),
            pl.BlockSpec(w1.shape, lambda n: (0, 0)),
            pl.BlockSpec(b1.shape, lambda n: (0, 0)),
            pl.BlockSpec(w2.shape, lambda n: (0, 0)),
            pl.BlockSpec(b2.shape, lambda n: (0, 0)),
            pl.BlockSpec(w3.shape, lambda n: (0, 0)),
            pl.BlockSpec(b3.shape, lambda n: (0, 0)),
            pl.BlockSpec((1, PP), lambda n: (0, 0)),
        ],
        out_specs=pl.BlockSpec((1, C_OUT_P, PP), lambda n: (n, 0, 0)),
        scratch_shapes=[
            pltpu.VMEM((C1, M + PP + M), jnp.bfloat16),     # padded pqc output
            pltpu.VMEM((HID, M + PP + M), jnp.bfloat16),    # padded conv_in output
            pltpu.VMEM((9 * C1, PP), jnp.bfloat16),         # conv_in im2col
            pltpu.VMEM((9 * HID, PP), jnp.bfloat16),        # conv_out im2col
        ],
        compiler_params=pltpu.CompilerParams(dimension_semantics=("parallel",)),
    )(zp, w1, b1, w2, b2, w3, b3, mask)

    # Strip channel pad, lane padding + halo, restore NCHW.
    out = out_flat[:, :c_out, :P].reshape(N, c_out, Hp, Wp)[:, :, 1:1 + H, 1:1 + W]
    return out


# ------------------------- parameter layout conversion -------------------------
def prepare_params(raw):
    """PyTorch OIHW weights -> fused-kernel layouts (bf16 matmul weights, f32 biases)."""
    C_LAT = raw["pqc_w"].shape[0]
    HID = raw["ci_w"].shape[0]
    C_OUT = raw["co_w"].shape[0]
    C1 = _round_up(C_LAT, 8)        # pad 1x1 out-channels to a full sublane group
    C_OUT_P = _round_up(C_OUT, 8)   # pad output channels -> unmasked (8,128) stores

    w1 = jnp.zeros((C1, C_LAT), jnp.float32).at[:C_LAT].set(raw["pqc_w"][:, :, 0, 0])
    w1 = w1.astype(jnp.bfloat16)
    b1 = jnp.zeros((C1, 1), jnp.float32).at[:C_LAT, 0].set(raw["pqc_b"])

    # conv_in: (O,I,3,3) -> (O,kh,kw,I) -> pad I to C1 -> (O, 9*C1), bf16.
    w2 = jnp.transpose(raw["ci_w"], (0, 2, 3, 1))
    w2 = jnp.pad(w2, ((0, 0), (0, 0), (0, 0), (0, C1 - C_LAT)))
    w2 = w2.reshape(HID, 9 * C1).astype(jnp.bfloat16)
    b2 = raw["ci_b"].reshape(HID, 1).astype(jnp.float32)

    # conv_out: (O,I,3,3) -> (O, 9*HID) -> pad O to C_OUT_P, bf16.
    w3 = jnp.transpose(raw["co_w"], (0, 2, 3, 1)).reshape(C_OUT, 9 * HID)
    w3 = jnp.pad(w3, ((0, C_OUT_P - C_OUT), (0, 0))).astype(jnp.bfloat16)
    b3 = jnp.zeros((C_OUT_P, 1), jnp.float32).at[:C_OUT, 0].set(raw["co_b"])

    return {"w1": w1, "b1": b1, "w2": w2, "b2": b2, "w3": w3, "b3": b3}


# ---------------------------- pure-JAX reference ------------------------------
def _ref_conv(x_nchw, w_oihw, b, pad):
    y = jax.lax.conv_general_dilated(
        x_nchw, w_oihw, window_strides=(1, 1),
        padding=[(pad, pad), (pad, pad)],
        dimension_numbers=("NCHW", "OIHW", "NCHW"),
        precision=jax.lax.Precision.HIGHEST)
    return y + b[None, :, None, None]


def vd_reference(z_nchw, raw):
    x = _ref_conv(z_nchw, raw["pqc_w"], raw["pqc_b"], 0)
    x = _ref_conv(x, raw["ci_w"], raw["ci_b"], 1)
    x = x * jax.nn.sigmoid(x)
    x = _ref_conv(x, raw["co_w"], raw["co_b"], 1)
    return x


if __name__ == "__main__":
    key = jax.random.PRNGKey(0)
    k_z, k1, k2, k3, k4, k5, k6 = jax.random.split(key, 7)

    N, C_LAT, HID, C_OUT, H, W = 2, 4, 32, 3, 16, 16

    # Deterministic parameter init (PyTorch layouts: OIHW weights, (O,) biases).
    raw = {
        "pqc_w": jax.random.normal(k1, (C_LAT, C_LAT, 1, 1), jnp.float32) * 0.2,
        "pqc_b": jax.random.normal(k2, (C_LAT,), jnp.float32) * 0.05,
        "ci_w": jax.random.normal(k3, (HID, C_LAT, 3, 3), jnp.float32) * 0.2,
        "ci_b": jax.random.normal(k4, (HID,), jnp.float32) * 0.05,
        "co_w": jax.random.normal(k5, (C_OUT, HID, 3, 3), jnp.float32) * 0.1,
        "co_b": jax.random.normal(k6, (C_OUT,), jnp.float32) * 0.05,
    }
    params = prepare_params(raw)
    z = jax.random.normal(k_z, (N, C_LAT, H, W), jnp.float32)   # NCHW, like PyTorch

    out = jax.block_until_ready(vd_forward(z, params, c_out=C_OUT))
    assert out.shape == (N, C_OUT, H, W), out.shape

    ref = jax.block_until_ready(vd_reference(z, raw))
    # Kernel runs all conv matmuls on the native bf16 MXU path (input/weights/scratch in
    # bf16, f32 accumulation); vs. the f32 HIGHEST reference this gives ~1e-3..1e-2 abs
    # deviation.
    np.testing.assert_allclose(np.asarray(out), np.asarray(ref), rtol=2e-2, atol=3e-2)

    print("KERNEL_OK")
</pallas_src>

<mosaic_0001>
module attributes {stable_mosaic.version = 11 : i64} {
  func.func @_vd_fused_kernel(%arg0: i32, %arg1: memref<1x4x384xbf16, #tpu.memory_space<vmem>>, %arg2: memref<8x4xbf16, #tpu.memory_space<vmem>>, %arg3: memref<8x1xf32, #tpu.memory_space<vmem>>, %arg4: memref<32x72xbf16, #tpu.memory_space<vmem>>, %arg5: memref<32x1xf32, #tpu.memory_space<vmem>>, %arg6: memref<8x288xbf16, #tpu.memory_space<vmem>>, %arg7: memref<8x1xf32, #tpu.memory_space<vmem>>, %arg8: memref<1x384xf32, #tpu.memory_space<vmem>>, %arg9: memref<1x8x384xf32, #tpu.memory_space<vmem>>, %arg10: memref<8x640xbf16, #tpu.memory_space<vmem>>, %arg11: memref<32x640xbf16, #tpu.memory_space<vmem>>, %arg12: memref<72x384xbf16, #tpu.memory_space<vmem>>, %arg13: memref<288x384xbf16, #tpu.memory_space<vmem>>) attributes {dimension_semantics = [#tpu.dimension_semantics<parallel>], iteration_bounds = array<i64: 2>, scalar_prefetch = 0 : i64, scratch_operands = 4 : i64, tpu.core_type = #tpu.core_type<tc>, window_params = [{transform_indices = @transform_0, window_bounds = array<i64: 1, 4, 384>}, {pipeline_mode = #tpu.pipeline_mode<synchronous>, transform_indices = @transform_1, window_bounds = array<i64: 8, 4>}, {pipeline_mode = #tpu.pipeline_mode<synchronous>, transform_indices = @transform_2, window_bounds = array<i64: 8, 1>}, {pipeline_mode = #tpu.pipeline_mode<synchronous>, transform_indices = @transform_3, window_bounds = array<i64: 32, 72>}, {pipeline_mode = #tpu.pipeline_mode<synchronous>, transform_indices = @transform_4, window_bounds = array<i64: 32, 1>}, {pipeline_mode = #tpu.pipeline_mode<synchronous>, transform_indices = @transform_5, window_bounds = array<i64: 8, 288>}, {pipeline_mode = #tpu.pipeline_mode<synchronous>, transform_indices = @transform_6, window_bounds = array<i64: 8, 1>}, {pipeline_mode = #tpu.pipeline_mode<synchronous>, transform_indices = @transform_7, window_bounds = array<i64: 1, 384>}, {transform_indices = @transform_8, window_bounds = array<i64: 1, 8, 384>}]} {
    %c0 = arith.constant 0 : index
    %c0_0 = arith.constant 0 : index
    %0 = vector.load %arg8[%c0, %c0_0] : memref<1x384xf32, #tpu.memory_space<vmem>>, vector<1x384xf32>
    %cst = arith.constant 0.000000e+00 : f32
    %1 = vector.broadcast %cst : f32 to vector<1x384xf32>
    %2 = arith.cmpf one, %0, %1 : vector<1x384xf32>
    %c0_1 = arith.constant 0 : index
    %c0_2 = arith.constant 0 : index
    %3 = vector.load %arg2[%c0_1, %c0_2] : memref<8x4xbf16, #tpu.memory_space<vmem>>, vector<8x4xbf16>
    %c0_3 = arith.constant 0 : index
    %c0_4 = arith.constant 0 : index
    %c0_5 = arith.constant 0 : index
    %4 = vector.load %arg1[%c0_3, %c0_4, %c0_5] : memref<1x4x384xbf16, #tpu.memory_space<vmem>>, vector<1x4x384xbf16>
    %5 = vector.shape_cast %4 : vector<1x4x384xbf16> to vector<4x384xbf16>
    %cst_6 = arith.constant dense<0.000000e+00> : vector<8x384xf32>
    %6 = tpu.matmul %3, %5, %cst_6 {dimension_numbers = #tpu.dot_dimension_numbers<[1], [0], [0], [1], [0, 0, 1, 1], [], []>} : vector<8x4xbf16>, vector<4x384xbf16>, vector<8x384xf32> -> vector<8x384xf32>
    %c0_7 = arith.constant 0 : index
    %c0_8 = arith.constant 0 : index
    %7 = vector.load %arg3[%c0_7, %c0_8] : memref<8x1xf32, #tpu.memory_space<vmem>>, vector<8x1xf32>
    %8 = vector.broadcast %7 : vector<8x1xf32> to vector<8x384xf32>
    %9 = vector.broadcast %0 : vector<1x384xf32> to vector<8x384xf32>
    %10 = arith.mulf %8, %9 : vector<8x384xf32>
    %11 = arith.addf %6, %10 : vector<8x384xf32>
    %12 = arith.truncf %11 : vector<8x384xf32> to vector<8x384xbf16>
    %c0_9 = arith.constant 0 : index
    %c128 = arith.constant 128 : index
    %13 = vector.load %arg10[%c0_9, %c128] : memref<8x640xbf16, #tpu.memory_space<vmem>>, vector<8x384xbf16>
    tpu.vector_store %arg10[%c0_9, %c128], %12 {strides = array<i32>} : memref<8x640xbf16, #tpu.memory_space<vmem>>, vector<8x384xbf16>,
    %c0_10 = arith.constant 0 : index
    %c109 = arith.constant 109 : index
    %14 = vector.load %arg10[%c0_10, %c109] : memref<8x640xbf16, #tpu.memory_space<vmem>>, vector<8x384xbf16>
    %c0_11 = arith.constant 0 : index
    %c0_12 = arith.constant 0 : index
    %15 = vector.load %arg12[%c0_11, %c0_12] : memref<72x384xbf16, #tpu.memory_space<vmem>>, vector<8x384xbf16>
    tpu.vector_store %arg12[%c0_11, %c0_12], %14 {strides = array<i32>} : memref<72x384xbf16, #tpu.memory_space<vmem>>, vector<8x384xbf16>,
    %c0_13 = arith.constant 0 : index
    %c110 = arith.constant 110 : index
    %16 = vector.load %arg10[%c0_13, %c110] : memref<8x640xbf16, #tpu.memory_space<vmem>>, vector<8x384xbf16>
    %c8 = arith.constant 8 : index
    %c0_14 = arith.constant 0 : index
    %17 = vector.load %arg12[%c8, %c0_14] : memref<72x384xbf16, #tpu.memory_space<vmem>>, vector<8x384xbf16>
    tpu.vector_store %arg12[%c8, %c0_14], %16 {strides = array<i32>} : memref<72x384xbf16, #tpu.memory_space<vmem>>, vector<8x384xbf16>,
    %c0_15 = arith.constant 0 : index
    %c111 = arith.constant 111 : index
    %18 = vector.load %arg10[%c0_15, %c111] : memref<8x640xbf16, #tpu.memory_space<vmem>>, vector<8x384xbf16>
    %c16 = arith.constant 16 : index
    %c0_16 = arith.constant 0 : index
    %19 = vector.load %arg12[%c16, %c0_16] : memref<72x384xbf16, #tpu.memory_space<vmem>>, vector<8x384xbf16>
    tpu.vector_store %arg12[%c16, %c0_16], %18 {strides = array<i32>} : memref<72x384xbf16, #tpu.memory_space<vmem>>, vector<8x384xbf16>,
    %c0_17 = arith.constant 0 : index
    %c127 = arith.constant 127 : index
    %20 = vector.load %arg10[%c0_17, %c127] : memref<8x640xbf16, #tpu.memory_space<vmem>>, vector<8x384xbf16>
    %c24 = arith.constant 24 : index
    %c0_18 = arith.constant 0 : index
    %21 = vector.load %arg12[%c24, %c0_18] : memref<72x384xbf16, #tpu.memory_space<vmem>>, vector<8x384xbf16>
    tpu.vector_store %arg12[%c24, %c0_18], %20 {strides = array<i32>} : memref<72x384xbf16, #tpu.memory_space<vmem>>, vector<8x384xbf16>,
    %c0_19 = arith.constant 0 : index
    %c128_20 = arith.constant 128 : index
    %22 = vector.load %arg10[%c0_19, %c128_20] : memref<8x640xbf16, #tpu.memory_space<vmem>>, vector<8x384xbf16>
    %c32 = arith.constant 32 : index
    %c0_21 = arith.constant 0 : index
    %23 = vector.load %arg12[%c32, %c0_21] : memref<72x384xbf16, #tpu.memory_space<vmem>>, vector<8x384xbf16>
    tpu.vector_store %arg12[%c32, %c0_21], %22 {strides = array<i32>} : memref<72x384xbf16, #tpu.memory_space<vmem>>, vector<8x384xbf16>,
    %c0_22 = arith.constant 0 : index
    %c129 = arith.constant 129 : index
    %24 = vector.load %arg10[%c0_22, %c129] : memref<8x640xbf16, #tpu.memory_space<vmem>>, vector<8x384xbf16>
    %c40 = arith.constant 40 : index
    %c0_23 = arith.constant 0 : index
    %25 = vector.load %arg12[%c40, %c0_23] : memref<72x384xbf16, #tpu.memory_space<vmem>>, vector<8x384xbf16>
    tpu.vector_store %arg12[%c40, %c0_23], %24 {strides = array<i32>} : memref<72x384xbf16, #tpu.memory_space<vmem>>, vector<8x384xbf16>,
    %c0_24 = arith.constant 0 : index
    %c145 = arith.constant 145 : index
    %26 = vector.load %arg10[%c0_24, %c145] : memref<8x640xbf16, #tpu.memory_space<vmem>>, vector<8x384xbf16>
    %c48 = arith.constant 48 : index
    %c0_25 = arith.constant 0 : index
    %27 = vector.load %arg12[%c48, %c0_25] : memref<72x384xbf16, #tpu.memory_space<vmem>>, vector<8x384xbf16>
    tpu.vector_store %arg12[%c48, %c0_25], %26 {strides = array<i32>} : memref<72x384xbf16, #tpu.memory_space<vmem>>, vector<8x384xbf16>,
    %c0_26 = arith.constant 0 : index
    %c146 = arith.constant 146 : index
    %28 = vector.load %arg10[%c0_26, %c146] : memref<8x640xbf16, #tpu.memory_space<vmem>>, vector<8x384xbf16>
    %c56 = arith.constant 56 : index
    %c0_27 = arith.constant 0 : index
    %29 = vector.load %arg12[%c56, %c0_27] : memref<72x384xbf16, #tpu.memory_space<vmem>>, vector<8x384xbf16>
    tpu.vector_store %arg12[%c56, %c0_27], %28 {strides = array<i32>} : memref<72x384xbf16, #tpu.memory_space<vmem>>, vector<8x384xbf16>,
    %c0_28 = arith.constant 0 : index
    %c147 = arith.constant 147 : index
    %30 = vector.load %arg10[%c0_28, %c147] : memref<8x640xbf16, #tpu.memory_space<vmem>>, vector<8x384xbf16>
    %c64 = arith.constant 64 : index
    %c0_29 = arith.constant 0 : index
    %31 = vector.load %arg12[%c64, %c0_29] : memref<72x384xbf16, #tpu.memory_space<vmem>>, vector<8x384xbf16>
    tpu.vector_store %arg12[%c64, %c0_29], %30 {strides = array<i32>} : memref<72x384xbf16, #tpu.memory_space<vmem>>, vector<8x384xbf16>,
    %c0_30 = arith.constant 0 : index
    %c0_31 = arith.constant 0 : index
    %32 = vector.load %arg4[%c0_30, %c0_31] : memref<32x72xbf16, #tpu.memory_space<vmem>>, vector<32x72xbf16>
    %c0_32 = arith.constant 0 : index
    %c0_33 = arith.constant 0 : index
    %33 = vector.load %arg12[%c0_32, %c0_33] : memref<72x384xbf16, #tpu.memory_space<vmem>>, vector<72x384xbf16>
    %cst_34 = arith.constant dense<0.000000e+00> : vector<32x384xf32>
    %34 = tpu.matmul %32, %33, %cst_34 {dimension_numbers = #tpu.dot_dimension_numbers<[1], [0], [0], [1], [0, 0, 1, 1], [], []>} : vector<32x72xbf16>, vector<72x384xbf16>, vector<32x384xf32> -> vector<32x384xf32>
    %c0_35 = arith.constant 0 : index
    %c0_36 = arith.constant 0 : index
    %35 = vector.load %arg5[%c0_35, %c0_36] : memref<32x1xf32, #tpu.memory_space<vmem>>, vector<32x1xf32>
    %36 = vector.broadcast %35 : vector<32x1xf32> to vector<32x384xf32>
    %37 = arith.addf %34, %36 : vector<32x384xf32>
    %38 = arith.negf %37 : vector<32x384xf32>
    %39 = math.exp %38 : vector<32x384xf32>
    %cst_37 = arith.constant 1.000000e+00 : f32
    %40 = vector.broadcast %cst_37 : f32 to vector<32x384xf32>
    %41 = arith.addf %40, %39 : vector<32x384xf32>
    %42 = arith.divf %40, %41 : vector<32x384xf32>
    %43 = arith.mulf %37, %42 : vector<32x384xf32>
    %cst_38 = arith.constant 0.000000e+00 : f32
    %44 = vector.shape_cast %2 : vector<1x384xi1> to vector<1x384xi1>
    %45 = vector.broadcast %44 : vector<1x384xi1> to vector<32x384xi1>
    %46 = vector.broadcast %cst_38 : f32 to vector<32x384xf32>
    %47 = arith.select %45, %43, %46 : vector<32x384xi1>, vector<32x384xf32>
    %48 = arith.truncf %47 : vector<32x384xf32> to vector<32x384xbf16>
    %c0_39 = arith.constant 0 : index
    %c128_40 = arith.constant 128 : index
    %49 = vector.load %arg11[%c0_39, %c128_40] : memref<32x640xbf16, #tpu.memory_space<vmem>>, vector<32x384xbf16>
    tpu.vector_store %arg11[%c0_39, %c128_40], %48 {strides = array<i32>} : memref<32x640xbf16, #tpu.memory_space<vmem>>, vector<32x384xbf16>,
    %c0_41 = arith.constant 0 : index
    %c109_42 = arith.constant 109 : index
    %50 = vector.load %arg11[%c0_41, %c109_42] : memref<32x640xbf16, #tpu.memory_space<vmem>>, vector<32x384xbf16>
    %c0_43 = arith.constant 0 : index
    %c0_44 = arith.constant 0 : index
    %51 = vector.load %arg13[%c0_43, %c0_44] : memref<288x384xbf16, #tpu.memory_space<vmem>>, vector<32x384xbf16>
    tpu.vector_store %arg13[%c0_43, %c0_44], %50 {strides = array<i32>} : memref<288x384xbf16, #tpu.memory_space<vmem>>, vector<32x384xbf16>,
    %c0_45 = arith.constant 0 : index
    %c110_46 = arith.constant 110 : index
    %52 = vector.load %arg11[%c0_45, %c110_46] : memref<32x640xbf16, #tpu.memory_space<vmem>>, vector<32x384xbf16>
    %c32_47 = arith.constant 32 : index
    %c0_48 = arith.constant 0 : index
    %53 = vector.load %arg13[%c32_47, %c0_48] : memref<288x384xbf16, #tpu.memory_space<vmem>>, vector<32x384xbf16>
    tpu.vector_store %arg13[%c32_47, %c0_48], %52 {strides = array<i32>} : memref<288x384xbf16, #tpu.memory_space<vmem>>, vector<32x384xbf16>,
    %c0_49 = arith.constant 0 : index
    %c111_50 = arith.constant 111 : index
    %54 = vector.load %arg11[%c0_49, %c111_50] : memref<32x640xbf16, #tpu.memory_space<vmem>>, vector<32x384xbf16>
    %c64_51 = arith.constant 64 : index
    %c0_52 = arith.constant 0 : index
    %55 = vector.load %arg13[%c64_51, %c0_52] : memref<288x384xbf16, #tpu.memory_space<vmem>>, vector<32x384xbf16>
    tpu.vector_store %arg13[%c64_51, %c0_52], %54 {strides = array<i32>} : memref<288x384xbf16, #tpu.memory_space<vmem>>, vector<32x384xbf16>,
    %c0_53 = arith.constant 0 : index
    %c127_54 = arith.constant 127 : index
    %56 = vector.load %arg11[%c0_53, %c127_54] : memref<32x640xbf16, #tpu.memory_space<vmem>>, vector<32x384xbf16>
    %c96 = arith.constant 96 : index
    %c0_55 = arith.constant 0 : index
    %57 = vector.load %arg13[%c96, %c0_55] : memref<288x384xbf16, #tpu.memory_space<vmem>>, vector<32x384xbf16>
    tpu.vector_store %arg13[%c96, %c0_55], %56 {strides = array<i32>} : memref<288x384xbf16, #tpu.memory_space<vmem>>, vector<32x384xbf16>,
    %c0_56 = arith.constant 0 : index
    %c128_57 = arith.constant 128 : index
    %58 = vector.load %arg11[%c0_56, %c128_57] : memref<32x640xbf16, #tpu.memory_space<vmem>>, vector<32x384xbf16>
    %c128_58 = arith.constant 128 : index
    %c0_59 = arith.constant 0 : index
    %59 = vector.load %arg13[%c128_58, %c0_59] : memref<288x384xbf16, #tpu.memory_space<vmem>>, vector<32x384xbf16>
    tpu.vector_store %arg13[%c128_58, %c0_59], %58 {strides = array<i32>} : memref<288x384xbf16, #tpu.memory_space<vmem>>, vector<32x384xbf16>,
    %c0_60 = arith.constant 0 : index
    %c129_61 = arith.constant 129 : index
    %60 = vector.load %arg11[%c0_60, %c129_61] : memref<32x640xbf16, #tpu.memory_space<vmem>>, vector<32x384xbf16>
    %c160 = arith.constant 160 : index
    %c0_62 = arith.constant 0 : index
    %61 = vector.load %arg13[%c160, %c0_62] : memref<288x384xbf16, #tpu.memory_space<vmem>>, vector<32x384xbf16>
    tpu.vector_store %arg13[%c160, %c0_62], %60 {strides = array<i32>} : memref<288x384xbf16, #tpu.memory_space<vmem>>, vector<32x384xbf16>,
    %c0_63 = arith.constant 0 : index
    %c145_64 = arith.constant 145 : index
    %62 = vector.load %arg11[%c0_63, %c145_64] : memref<32x640xbf16, #tpu.memory_space<vmem>>, vector<32x384xbf16>
    %c192 = arith.constant 192 : index
    %c0_65 = arith.constant 0 : index
    %63 = vector.load %arg13[%c192, %c0_65] : memref<288x384xbf16, #tpu.memory_space<vmem>>, vector<32x384xbf16>
    tpu.vector_store %arg13[%c192, %c0_65], %62 {strides = array<i32>} : memref<288x384xbf16, #tpu.memory_space<vmem>>, vector<32x384xbf16>,
    %c0_66 = arith.constant 0 : index
    %c146_67 = arith.constant 146 : index
    %64 = vector.load %arg11[%c0_66, %c146_67] : memref<32x640xbf16, #tpu.memory_space<vmem>>, vector<32x384xbf16>
    %c224 = arith.constant 224 : index
    %c0_68 = arith.constant 0 : index
    %65 = vector.load %arg13[%c224, %c0_68] : memref<288x384xbf16, #tpu.memory_space<vmem>>, vector<32x384xbf16>
    tpu.vector_store %arg13[%c224, %c0_68], %64 {strides = array<i32>} : memref<288x384xbf16, #tpu.memory_space<vmem>>, vector<32x384xbf16>,
    %c0_69 = arith.constant 0 : index
    %c147_70 = arith.constant 147 : index
    %66 = vector.load %arg11[%c0_69, %c147_70] : memref<32x640xbf16, #tpu.memory_space<vmem>>, vector<32x384xbf16>
    %c256 = arith.constant 256 : index
    %c0_71 = arith.constant 0 : index
    %67 = vector.load %arg13[%c256, %c0_71] : memref<288x384xbf16, #tpu.memory_space<vmem>>, vector<32x384xbf16>
    tpu.vector_store %arg13[%c256, %c0_71], %66 {strides = array<i32>} : memref<288x384xbf16, #tpu.memory_space<vmem>>, vector<32x384xbf16>,
    %c0_72 = arith.constant 0 : index
    %c0_73 = arith.constant 0 : index
    %68 = vector.load %arg6[%c0_72, %c0_73] : memref<8x288xbf16, #tpu.memory_space<vmem>>, vector<8x288xbf16>
    %c0_74 = arith.constant 0 : index
    %c0_75 = arith.constant 0 : index
    %69 = vector.load %arg13[%c0_74, %c0_75] : memref<288x384xbf16, #tpu.memory_space<vmem>>, vector<288x384xbf16>
    %cst_76 = arith.constant dense<0.000000e+00> : vector<8x384xf32>
    %70 = tpu.matmul %68, %69, %cst_76 {dimension_numbers = #tpu.dot_dimension_numbers<[1], [0], [0], [1], [0, 0, 1, 1], [], []>} : vector<8x288xbf16>, vector<288x384xbf16>, vector<8x384xf32> -> vector<8x384xf32>
    %c0_77 = arith.constant 0 : index
    %c0_78 = arith.constant 0 : index
    %71 = vector.load %arg7[%c0_77, %c0_78] : memref<8x1xf32, #tpu.memory_space<vmem>>, vector<8x1xf32>
    %72 = vector.broadcast %71 : vector<8x1xf32> to vector<8x384xf32>
    %73 = arith.addf %70, %72 : vector<8x384xf32>
    %c0_79 = arith.constant 0 : index
    %c0_80 = arith.constant 0 : index
    %c0_81 = arith.constant 0 : index
    %74 = vector.load %arg9[%c0_79, %c0_80, %c0_81] : memref<1x8x384xf32, #tpu.memory_space<vmem>>, vector<1x8x384xf32>
    %75 = vector.shape_cast %74 : vector<1x8x384xf32> to vector<8x384xf32>
    %76 = vector.shape_cast %73 : vector<8x384xf32> to vector<1x8x384xf32>
    tpu.vector_store %arg9[%c0_79, %c0_80, %c0_81], %76 {strides = array<i32>} : memref<1x8x384xf32, #tpu.memory_space<vmem>>, vector<1x8x384xf32>,
    return
  }
  func.func @transform_0(%arg0: i32) -> (i32, i32, i32) {
    %c0_i32 = arith.constant 0 : i32
    %c0_i32_0 = arith.constant 0 : i32
    %c0_i32_1 = arith.constant 0 : i32
    return %arg0, %c0_i32, %c0_i32_0 : i32, i32, i32
  }
  func.func @transform_1(%arg0: i32) -> (i32, i32) {
    %c0_i32 = arith.constant 0 : i32
    %c0_i32_0 = arith.constant 0 : i32
    %c0_i32_1 = arith.constant 0 : i32
    return %c0_i32, %c0_i32_0 : i32, i32
  }
  func.func @transform_2(%arg0: i32) -> (i32, i32) {
    %c0_i32 = arith.constant 0 : i32
    %c0_i32_0 = arith.constant 0 : i32
    %c0_i32_1 = arith.constant 0 : i32
    return %c0_i32, %c0_i32_0 : i32, i32
  }
  func.func @transform_3(%arg0: i32) -> (i32, i32) {
    %c0_i32 = arith.constant 0 : i32
    %c0_i32_0 = arith.constant 0 : i32
    %c0_i32_1 = arith.constant 0 : i32
    return %c0_i32, %c0_i32_0 : i32, i32
  }
  func.func @transform_4(%arg0: i32) -> (i32, i32) {
    %c0_i32 = arith.constant 0 : i32
    %c0_i32_0 = arith.constant 0 : i32
    %c0_i32_1 = arith.constant 0 : i32
    return %c0_i32, %c0_i32_0 : i32, i32
  }
  func.func @transform_5(%arg0: i32) -> (i32, i32) {
    %c0_i32 = arith.constant 0 : i32
    %c0_i32_0 = arith.constant 0 : i32
    %c0_i32_1 = arith.constant 0 : i32
    return %c0_i32, %c0_i32_0 : i32, i32
  }
  func.func @transform_6(%arg0: i32) -> (i32, i32) {
    %c0_i32 = arith.constant 0 : i32
    %c0_i32_0 = arith.constant 0 : i32
    %c0_i32_1 = arith.constant 0 : i32
    return %c0_i32, %c0_i32_0 : i32, i32
  }
  func.func @transform_7(%arg0: i32) -> (i32, i32) {
    %c0_i32 = arith.constant 0 : i32
    %c0_i32_0 = arith.constant 0 : i32
    %c0_i32_1 = arith.constant 0 : i32
    return %c0_i32, %c0_i32_0 : i32, i32
  }
  func.func @transform_8(%arg0: i32) -> (i32, i32, i32) {
    %c0_i32 = arith.constant 0 : i32
    %c0_i32_0 = arith.constant 0 : i32
    %c0_i32_1 = arith.constant 0 : i32
    return %arg0, %c0_i32, %c0_i32_0 : i32, i32, i32
  }
}

</mosaic_0001>

<llo_original>
// kernel: vd_forward.1
$region0: #{vd_forward.1}
  #allocation0 [shape = 'u32[]', space=smem, size = 0x4, offset = 0x4, fixed_abs, tag = 'smem constant byte address 0x4 - core index']
  #allocation1 [shape = 'u32[144,128]{1,0:T(1,128)}', space=vmem, size = 0x12000, scoped, tag = 'internal scratch']
  #allocation2 [shape = 'bf16[8,640]{1,0:T(8,128)(2,1)}', space=vmem, size = 0x2800, scoped, tag = 'scratch operand']
  #allocation3 [shape = 'bf16[32,640]{1,0:T(8,128)(2,1)}', space=vmem, size = 0xa000, scoped, tag = 'scratch operand']
  #allocation4 [shape = 'bf16[72,384]{1,0:T(8,128)(2,1)}', space=vmem, size = 0xd800, scoped, tag = 'scratch operand']
  #allocation5 [shape = 'bf16[288,384]{1,0:T(8,128)(2,1)}', space=vmem, size = 0x36000, scoped, tag = 'scratch operand']
  %s0 = inlined_call_operand.vmem [shape: bf16[2,4,384], index: 0, kind: input, shape index: {}]
  %s1 = inlined_call_operand.vmem [shape: bf16[8,4], index: 1, kind: input, shape index: {}]
  %s2 = inlined_call_operand.vmem [shape: f32[8,1], index: 2, kind: input, shape index: {}]
  %s3 = inlined_call_operand.vmem [shape: bf16[32,72], index: 3, kind: input, shape index: {}]
  %s4 = inlined_call_operand.vmem [shape: f32[32,1], index: 4, kind: input, shape index: {}]
  %s5 = inlined_call_operand.vmem [shape: bf16[8,288], index: 5, kind: input, shape index: {}]
  %s6 = inlined_call_operand.vmem [shape: f32[8,1], index: 6, kind: input, shape index: {}]
  %s7 = inlined_call_operand.vmem [shape: f32[1,384], index: 7, kind: input, shape index: {}]
  %s8 = inlined_call_operand.vmem [shape: f32[2,8,384], index: 8, kind: output, shape index: {}]
  %s9 = sld [smem:[#allocation0]]
  $region65: #{vd_forward.1} parent=0
    _
  %s11 = ssub.s32 1, %s9
  %s12 = scalar_select 0, %s11, %s9
  loop: start=0, step=1, limit=4
  $region2: #{vd_forward.1} parent=0 // loop_pre_header
    _
  $region3: #{vd_forward.1} parent=0 // loop_header
    %s14 = sphi 0, %s18
    %p15 = scmp.ge.s32.totalorder %s14, 4
    %s24 = sphi 0, %s26
    %s27 = sphi 0, %s24
    %s28 = sphi 0, %s27
    %s44 = sphi 0, %s28
    %s48 = sphi 0, %s48
    %s50 = sphi 0, %s48
    %s51 = sphi 0, %s50
    %s65 = sphi 0, %s51
    %s69 = sphi 0, %s69
    %s71 = sphi 0, %s69
    %s72 = sphi 0, %s71
    %s86 = sphi 0, %s72
    %s90 = sphi 0, %s90
    %s92 = sphi 0, %s90
    %s93 = sphi 0, %s92
    %s107 = sphi 0, %s93
    %s111 = sphi 0, %s111
    %s113 = sphi 0, %s111
    %s114 = sphi 0, %s113
    %s128 = sphi 0, %s114
    %s132 = sphi 0, %s132
    %s134 = sphi 0, %s132
    %s135 = sphi 0, %s134
    %s149 = sphi 0, %s135
    %s153 = sphi 0, %s153
    %s155 = sphi 0, %s153
    %s156 = sphi 0, %s155
    %s170 = sphi 0, %s156
    %s174 = sphi 0, %s174
    %s176 = sphi 0, %s174
    %s177 = sphi 0, %s176
    %s191 = sphi 0, %s177
    %s197 = sphi 0, %s199
    %s200 = sphi 0, %s197
    %s201 = sphi 0, %s200
    %s217 = sphi 0, %s201
  $region4: #{vd_forward.1} parent=0 // loop_header_branch
    %17 = sbr.rel (%p15) target = $region8
  $region5: #{vd_forward.1} parent=0 // loop_body
    %s19 = ssub.s32 %s14, 1
    %s20 = ssub.s32 %s14, 2
    %s21 = sadd.s32 %s14, 1
    %s22 = ssub.s32 %s14, %s21
    %p23 = scmp.eq.s32.totalorder %s22, 0
    %s25 = sadd.s32 %s24, 1
    %s26 = scalar_select %p23, %s24, %s25
    %p29 = pneg %p23
    %p30 = scmp.eq.s32.totalorder %s14, 1
    %p31 = por %p29, %p30
    %p32 = scmp.ne.s32.totalorder %s24, %s27
    %p33 = scmp.eq.s32.totalorder %s14, 0
    %p34 = por %p32, %p33
    %p35 = scmp.ne.s32.totalorder %s24, %s27
    %p36 = scmp.eq.s32.totalorder %s19, 1
    %p37 = por %p35, %p36
    %p38 = scmp.ne.s32.totalorder %s27, %s28
    %p39 = scmp.eq.s32.totalorder %s19, 0
    %p40 = por %p38, %p39
    %p41 = scmp.ne.s32.totalorder %s27, %s28
    %p42 = scmp.eq.s32.totalorder %s20, 1
    %p43 = por %p41, %p42
    %p45 = scmp.ne.s32.totalorder %s28, %s44
    %p46 = scmp.eq.s32.totalorder %s20, 0
    %p47 = por %p45, %p46
    %s49 = sadd.s32 %s48, 1
    %p52 = scmp.eq.s32.totalorder %s14, 1
    %p53 = scmp.ne.s32.totalorder %s48, %s50
    %p54 = scmp.eq.s32.totalorder %s14, 0
    %p55 = por %p53, %p54
    %p56 = scmp.ne.s32.totalorder %s48, %s50
    %p57 = scmp.eq.s32.totalorder %s19, 1
    %p58 = por %p56, %p57
    %p59 = scmp.ne.s32.totalorder %s50, %s51
    %p60 = scmp.eq.s32.totalorder %s19, 0
    %p61 = por %p59, %p60
    %p62 = scmp.ne.s32.totalorder %s50, %s51
    %p63 = scmp.eq.s32.totalorder %s20, 1
    %p64 = por %p62, %p63
    %p66 = scmp.ne.s32.totalorder %s51, %s65
    %p67 = scmp.eq.s32.totalorder %s20, 0
    %p68 = por %p66, %p67
    %s70 = sadd.s32 %s69, 1
    %p73 = scmp.eq.s32.totalorder %s14, 1
    %p74 = scmp.ne.s32.totalorder %s69, %s71
    %p75 = scmp.eq.s32.totalorder %s14, 0
    %p76 = por %p74, %p75
    %p77 = scmp.ne.s32.totalorder %s69, %s71
    %p78 = scmp.eq.s32.totalorder %s19, 1
    %p79 = por %p77, %p78
    %p80 = scmp.ne.s32.totalorder %s71, %s72
    %p81 = scmp.eq.s32.totalorder %s19, 0
    %p82 = por %p80, %p81
    %p83 = scmp.ne.s32.totalorder %s71, %s72
    %p84 = scmp.eq.s32.totalorder %s20, 1
    %p85 = por %p83, %p84
    %p87 = scmp.ne.s32.totalorder %s72, %s86
    %p88 = scmp.eq.s32.totalorder %s20, 0
    %p89 = por %p87, %p88
    %s91 = sadd.s32 %s90, 1
    %p94 = scmp.eq.s32.totalorder %s14, 1
    %p95 = scmp.ne.s32.totalorder %s90, %s92
    %p96 = scmp.eq.s32.totalorder %s14, 0
    %p97 = por %p95, %p96
    %p98 = scmp.ne.s32.totalorder %s90, %s92
    %p99 = scmp.eq.s32.totalorder %s19, 1
    %p100 = por %p98, %p99
    %p101 = scmp.ne.s32.totalorder %s92, %s93
    %p102 = scmp.eq.s32.totalorder %s19, 0
    %p103 = por %p101, %p102
    %p104 = scmp.ne.s32.totalorder %s92, %s93
    %p105 = scmp.eq.s32.totalorder %s20, 1
    %p106 = por %p104, %p105
    %p108 = scmp.ne.s32.totalorder %s93, %s107
    %p109 = scmp.eq.s32.totalorder %s20, 0
    %p110 = por %p108, %p109
    %s112 = sadd.s32 %s111, 1
    %p115 = scmp.eq.s32.totalorder %s14, 1
    %p116 = scmp.ne.s32.totalorder %s111, %s113
    %p117 = scmp.eq.s32.totalorder %s14, 0
    %p118 = por %p116, %p117
    %p119 = scmp.ne.s32.totalorder %s111, %s113
    %p120 = scmp.eq.s32.totalorder %s19, 1
    %p121 = por %p119, %p120
    %p122 = scmp.ne.s32.totalorder %s113, %s114
    %p123 = scmp.eq.s32.totalorder %s19, 0
    %p124 = por %p122, %p123
    %p125 = scmp.ne.s32.totalorder %s113, %s114
    %p126 = scmp.eq.s32.totalorder %s20, 1
    %p127 = por %p125, %p126
    %p129 = scmp.ne.s32.totalorder %s114, %s128
    %p130 = scmp.eq.s32.totalorder %s20, 0
    %p131 = por %p129, %p130
    %s133 = sadd.s32 %s132, 1
    %p136 = scmp.eq.s32.totalorder %s14, 1
    %p137 = scmp.ne.s32.totalorder %s132, %s134
    %p138 = scmp.eq.s32.totalorder %s14, 0
    %p139 = por %p137, %p138
    %p140 = scmp.ne.s32.totalorder %s132, %s134
    %p141 = scmp.eq.s32.totalorder %s19, 1
    %p142 = por %p140, %p141
    %p143 = scmp.ne.s32.totalorder %s134, %s135
    %p144 = scmp.eq.s32.totalorder %s19, 0
    %p145 = por %p143, %p144
    %p146 = scmp.ne.s32.totalorder %s134, %s135
    %p147 = scmp.eq.s32.totalorder %s20, 1
    %p148 = por %p146, %p147
    %p150 = scmp.ne.s32.totalorder %s135, %s149
    %p151 = scmp.eq.s32.totalorder %s20, 0
    %p152 = por %p150, %p151
    %s154 = sadd.s32 %s153, 1
    %p157 = scmp.eq.s32.totalorder %s14, 1
    %p158 = scmp.ne.s32.totalorder %s153, %s155
    %p159 = scmp.eq.s32.totalorder %s14, 0
    %p160 = por %p158, %p159
    %p161 = scmp.ne.s32.totalorder %s153, %s155
    %p162 = scmp.eq.s32.totalorder %s19, 1
    %p163 = por %p161, %p162
    %p164 = scmp.ne.s32.totalorder %s155, %s156
    %p165 = scmp.eq.s32.totalorder %s19, 0
    %p166 = por %p164, %p165
    %p167 = scmp.ne.s32.totalorder %s155, %s156
    %p168 = scmp.eq.s32.totalorder %s20, 1
    %p169 = por %p167, %p168
    %p171 = scmp.ne.s32.totalorder %s156, %s170
    %p172 = scmp.eq.s32.totalorder %s20, 0
    %p173 = por %p171, %p172
    %s175 = sadd.s32 %s174, 1
    %p178 = scmp.eq.s32.totalorder %s14, 1
    %p179 = scmp.ne.s32.totalorder %s174, %s176
    %p180 = scmp.eq.s32.totalorder %s14, 0
    %p181 = por %p179, %p180
    %p182 = scmp.ne.s32.totalorder %s174, %s176
    %p183 = scmp.eq.s32.totalorder %s19, 1
    %p184 = por %p182, %p183
    %p185 = scmp.ne.s32.totalorder %s176, %s177
    %p186 = scmp.eq.s32.totalorder %s19, 0
    %p187 = por %p185, %p186
    %p188 = scmp.ne.s32.totalorder %s176, %s177
    %p189 = scmp.eq.s32.totalorder %s20, 1
    %p190 = por %p188, %p189
    %p192 = scmp.ne.s32.totalorder %s177, %s191
    %p193 = scmp.eq.s32.totalorder %s20, 0
    %p194 = por %p192, %p193
    %s195 = ssub.s32 %s14, %s21
    %p196 = scmp.eq.s32.totalorder %s195, 0
    %s198 = sadd.s32 %s197, 1
    %s199 = scalar_select %p196, %s197, %s198
    %p202 = pneg %p196
    %p203 = scmp.eq.s32.totalorder %s14, 1
    %p204 = por %p202, %p203
    %p205 = scmp.ne.s32.totalorder %s197, %s200
    %p206 = scmp.eq.s32.totalorder %s14, 0
    %p207 = por %p205, %p206
    %p208 = scmp.ne.s32.totalorder %s197, %s200
    %p209 = scmp.eq.s32.totalorder %s19, 1
    %p210 = por %p208, %p209
    %p211 = scmp.ne.s32.totalorder %s200, %s201
    %p212 = scmp.eq.s32.totalorder %s19, 0
    %p213 = por %p211, %p212
    %p214 = scmp.ne.s32.totalorder %s200, %s201
    %p215 = scmp.eq.s32.totalorder %s20, 1
    %p216 = por %p214, %p215
    %p218 = scmp.ne.s32.totalorder %s201, %s217
    %p219 = scmp.eq.s32.totalorder %s20, 0
    %p220 = por %p218, %p219
    %p221 = scmp.le.s32.totalorder 1, %s14
    %p222 = scmp.lt.s32.totalorder %s14, 3
    %p223 = pnand %p221, %p222
    %p224 = pneg %p223
    // Predicated region
    $region9: #{vd_forward.1} parent=5 // pred_check
      _
    $region10: #{vd_forward.1} parent=5 // pred_check_branch
      %226 = sbr.rel (%p223) target = $region12
    $region11: #{vd_forward.1} parent=5 // pred_region
      %s227 = ssub.s32 %s14, 1
      // Predicated region
      $region13: #{vd_forward.1} parent=11 // pred_check
        %p228 = pneg %p61
      $region14: #{vd_forward.1} parent=11 // pred_check_branch
        %230 = sbr.rel (%p228) target = $region16
      $region15: #{vd_forward.1} parent=11 // pred_region
        _
      $region16: #{vd_forward.1} parent=11 // pred_fallthru
        _
      // Predicated region
      $region17: #{vd_forward.1} parent=11 // pred_check
        %p231 = pneg %p82
      $region18: #{vd_forward.1} parent=11 // pred_check_branch
        %233 = sbr.rel (%p231) target = $region20
      $region19: #{vd_forward.1} parent=11 // pred_region
        _
      $region20: #{vd_forward.1} parent=11 // pred_fallthru
        _
      // Predicated region
      $region21: #{vd_forward.1} parent=11 // pred_check
        %p234 = pneg %p103
      $region22: #{vd_forward.1} parent=11 // pred_check_branch
        %236 = sbr.rel (%p234) target = $region24
      $region23: #{vd_forward.1} parent=11 // pred_region
        _
      $region24: #{vd_forward.1} parent=11 // pred_fallthru
        _
      // Predicated region
      $region25: #{vd_forward.1} parent=11 // pred_check
        %p237 = pneg %p124
      $region26: #{vd_forward.1} parent=11 // pred_check_branch
        %239 = sbr.rel (%p237) target = $region28
      $region27: #{vd_forward.1} parent=11 // pred_region
        _
      $region28: #{vd_forward.1} parent=11 // pred_fallthru
        _
      // Predicated region
      $region29: #{vd_forward.1} parent=11 // pred_check
        %p240 = pneg %p145
      $region30: #{vd_forward.1} parent=11 // pred_check_branch
        %242 = sbr.rel (%p240) target = $region32
      $region31: #{vd_forward.1} parent=11 // pred_region
        _
      $region32: #{vd_forward.1} parent=11 // pred_fallthru
        _
      // Predicated region
      $region33: #{vd_forward.1} parent=11 // pred_check
        %p243 = pneg %p166
      $region34: #{vd_forward.1} parent=11 // pred_check_branch
        %245 = sbr.rel (%p243) target = $region36
      $region35: #{vd_forward.1} parent=11 // pred_region
        _
      $region36: #{vd_forward.1} parent=11 // pred_fallthru
        _
      // Predicated region
      $region37: #{vd_forward.1} parent=11 // pred_check
        %p246 = pneg %p187
      $region38: #{vd_forward.1} parent=11 // pred_check_branch
        %248 = sbr.rel (%p246) target = $region40
      $region39: #{vd_forward.1} parent=11 // pred_region
        _
      $region40: #{vd_forward.1} parent=11 // pred_fallthru
        _
    $region12: #{vd_forward.1} parent=5 // pred_fallthru
      _
    %p249 = scmp.lt.s32.totalorder %s14, 2
    // Predicated region
    $region41: #{vd_forward.1} parent=5 // pred_check
      %p250 = pneg %p249
    $region42: #{vd_forward.1} parent=5 // pred_check_branch
      %252 = sbr.rel (%p250) target = $region44
    $region43: #{vd_forward.1} parent=5 // pred_region
      // Predicated region
      $region45: #{vd_forward.1} parent=43 // pred_check
        %p253 = pneg %p34
      $region46: #{vd_forward.1} parent=43 // pred_check_branch
        %255 = sbr.rel (%p253) target = $region48
      $region47: #{vd_forward.1} parent=43 // pred_region
        %p256 = scmp.lt.s32.totalorder %s14, 1
        %s257 = scalar_select %p256, %s14, 1
        %s258 = smul.addr %s257, 3
        %s259 = smul.addr %s258, 2
        %s260 = scalar_lea.vmem %s0, %s259
      $region48: #{vd_forward.1} parent=43 // pred_fallthru
        _
    $region44: #{vd_forward.1} parent=5 // pred_fallthru
      _
    %p261 = scmp.le.s32.totalorder 1, %s14
    %p262 = scmp.lt.s32.totalorder %s14, 3
    %p263 = pnand %p261, %p262
    %p264 = pneg %p263
    // Predicated region
    $region49: #{vd_forward.1} parent=5 // pred_check
      _
    $region50: #{vd_forward.1} parent=5 // pred_check_branch
      %266 = sbr.rel (%p263) target = $region52
    $region51: #{vd_forward.1} parent=5 // pred_region
      %s267 = ssub.s32 %s14, 1
      %p268 = scmp.lt.s32.totalorder %s19, 1
      %s269 = scalar_select %p268, %s19, 1
      %s270 = smul.addr %s269, 3
      %s271 = smul.addr %s270, 2
      %s272 = scalar_lea.vmem %s0, %s271
      %p273 = pneg %p40
      %p274 = pneg %p37
      %p275 = pneg %p61
      %p276 = pneg %p58
      %p277 = pneg %p82
      %p278 = pneg %p79
      %p279 = pneg %p103
      %p280 = pneg %p100
      %p281 = pneg %p124
      %p282 = pneg %p121
      %p283 = pneg %p145
      %p284 = pneg %p142
      %p285 = pneg %p166
      %p286 = pneg %p163
      %p287 = pneg %p187
      %p288 = pneg %p184
      %p289 = pneg %p213
      %p290 = pneg %p210
      %p291 = scmp.lt.s32.totalorder %s19, 1
      %s292 = scalar_select %p291, %s19, 1
      %s293 = smul.addr %s292, 3
      %s294 = smul.addr %s293, 8
      %s295 = scalar_lea.vmem %s8, %s294
      %p296 = scmp.lt.s32.totalorder %s19, 1
      %s297 = scalar_select %p296, %s19, 1
      %s298 = smul.addr %s297, 3
      %s299 = smul.addr %s298, 2
      %s300 = scalar_lea.vmem %s0, %s299
      %p301 = scmp.lt.s32.totalorder %s19, 1
      %s302 = scalar_select %p301, %s19, 1
      %s303 = smul.addr %s302, 3
      %s304 = smul.addr %s303, 8
      %s305 = scalar_lea.vmem %s8, %s304
      %v307 = vld [vmem:[%s7] sm:$0x7]
      %vm308 = vcmp.ne.f32.partialorder %v307, 0.0
      %v309 = vld [vmem:[%s1] sm:$0xf]
      %v310 = vld [vmem:[%s300] sm:$0x3f]
      %v311 = vld [vmem:[%s2] sm:$0xff]
      %313 = vset.pattern.permute.xlu0 0
      %314 = vperm.xlu0 %313, %v311
      %v315 = vpop.permute.xlu0 %314
      %v318 = vlaneseq
      %v319 = vshrl.u32 %v318, 7
      %v320 = vsub.s32 0, %v319
      %v321 = vrot.slane %v307, %v320
      %v322 = vlaneseq
      %v323 = vshrl.u32 %v322, 7
      %v324 = vsub.s32 1, %v323
      %v325 = vrot.slane %v307, %v324
      %v326 = vlaneseq
      %v327 = vshrl.u32 %v326, 7
      %v328 = vsub.s32 2, %v327
      %v329 = vrot.slane %v307, %v328
      %v333 = vmul.f32 %v315, %v321
      %v334 = vmul.f32 %v315, %v325
      %v335 = vmul.f32 %v315, %v329
      %v337 = vcombine.high %v310, %v310
      %v339 = vunpack.c.l.s4 1983009808
      %v340 = vunpack.c.0.s8 %v339
      %v341 = vlaneseq
      %v342 = vshrl.u32 %v341, 7
      %v343 = vsub.s32 %v340, %v342
      %v344 = vrot.slane %v310, %v343
      %v346 = vunpack.c.l.s4 1983009808
      %v347 = vunpack.c.0.s8 %v346
      %v348 = vlaneseq
      %v349 = vshrl.u32 %v348, 7
      %v350 = vsub.s32 %v347, %v349
      %v351 = vrot.slane %v337, %v350
      %v352 = vcombine.high %v344, %v344
      %vm353 = vcmask 31744
      %v355 = vsel %vm353, %v309, 0
      %vm357 = vcmask 1041408
      %v359 = vsel %vm357, %v344, 0
      %v362 = vsel %vm357, %v352, 0
      %v365 = vsel %vm357, %v351, 0
      %367 = vmatprep.subr.bf16.mxu0 0
      %368 = vmatpush1.bf16.msra.mxu0 0
      %369 = vmatprep.subr.bf16.mxu0 0
      %370 = vmatpush1.bf16.msra.mxu0 0
      %371 = vmatprep.subr.bf16.mxu0 0
      %372 = vmatpush1.bf16.msra.mxu0 0
      %373 = vmatprep.subr.bf16.mxu0 0
      %374 = vmatpush1.bf16.msra.mxu0 0
      %375 = vmatprep.subr.bf16.mxu0 0
      %376 = vmatpush1.bf16.msra.mxu0 0
      %377 = vmatprep.subr.bf16.mxu0 0
      %378 = vmatpush1.bf16.msra.mxu0 0
      %379 = vmatprep.subr.bf16.mxu0 0
      %380 = vmatpush1.bf16.msra.mxu0 0
      %381 = vmatprep.subr.bf16.mxu0 %v362
      %382 = vmatpush1.bf16.msra.mxu0 %v359
      %383 = vmatprep.subr.bf16.mxu0 0
      %384 = vmatpush2.bf16.msra.mxu0 0
      %385 = vmatprep.subr.bf16.mxu0 0
      %386 = vmatpush2.bf16.msra.mxu0 0
      %387 = vmatprep.subr.bf16.mxu0 0
      %388 = vmatpush2.bf16.msra.mxu0 0
      %389 = vmatprep.subr.bf16.mxu0 0
      %390 = vmatpush2.bf16.msra.mxu0 0
      %391 = vmatprep.subr.bf16.mxu0 0
      %392 = vmatpush2.bf16.msra.mxu0 0
      %393 = vmatprep.subr.bf16.mxu0 0
      %394 = vmatpush2.bf16.msra.mxu0 0
      %395 = vmatprep.subr.bf16.mxu0 0
      %396 = vmatpush2.bf16.msra.mxu0 0
      %397 = vmatprep.subr.bf16.mxu0 0
      %398 = vmatpush2.bf16.msra.mxu0 0
      %399 = vmatprep.mubr.bf16.mxu0 0
      %400 = vmatmul.mubr.bf16.gmra.mxu0 %v355
      %v401 = vpop.f32.mrf.mxu0
      %v402 = vadd.f32 %v333, %v401
      %v403 = vpop.f32.mrf.mxu0
      %v404 = vadd.f32 %v334, %v403
      %v405 = vpop.f32.mrf.mxu0
      %v406 = vpop.f32.mrf.mxu0
      %407 = vdwg.mxu0
      %408 = vmatprep.subr.bf16.mxu0 0
      %409 = vmatpush1.bf16.msra.mxu0 0
      %410 = vmatprep.subr.bf16.mxu0 0
      %411 = vmatpush1.bf16.msra.mxu0 0
      %412 = vmatprep.subr.bf16.mxu0 0
      %413 = vmatpush1.bf16.msra.mxu0 0
      %414 = vmatprep.subr.bf16.mxu0 0
      %415 = vmatpush1.bf16.msra.mxu0 0
      %416 = vmatprep.subr.bf16.mxu0 0
      %417 = vmatpush1.bf16.msra.mxu0 0
      %418 = vmatprep.subr.bf16.mxu0 0
      %419 = vmatpush1.bf16.msra.mxu0 0
      %420 = vmatprep.subr.bf16.mxu0 0
      %421 = vmatpush1.bf16.msra.mxu0 0
      %422 = vmatprep.subr.bf16.mxu0 0
      %423 = vmatpush1.bf16.msra.mxu0 %v365
      %424 = vmatprep.subr.bf16.mxu0 0
      %425 = vmatpush2.bf16.msra.mxu0 0
      %426 = vmatprep.subr.bf16.mxu0 0
      %427 = vmatpush2.bf16.msra.mxu0 0
      %428 = vmatprep.subr.bf16.mxu0 0
      %429 = vmatpush2.bf16.msra.mxu0 0
      %430 = vmatprep.subr.bf16.mxu0 0
      %431 = vmatpush2.bf16.msra.mxu0 0
      %432 = vmatprep.subr.bf16.mxu0 0
      %433 = vmatpush2.bf16.msra.mxu0 0
      %434 = vmatprep.subr.bf16.mxu0 0
      %435 = vmatpush2.bf16.msra.mxu0 0
      %436 = vmatprep.subr.bf16.mxu0 0
      %437 = vmatpush2.bf16.msra.mxu0 0
      %438 = vmatprep.subr.bf16.mxu0 0
      %439 = vmatpush2.bf16.msra.mxu0 0
      %440 = vmatprep.mubr.bf16.mxu0 0
      %441 = vmatmul.mubr.bf16.gmra.mxu0 %v355
      %v442 = vpop.f32.mrf.mxu0
      %v443 = vadd.f32 %v335, %v442
      %v444 = vpop.f32.mrf.mxu0
      %v445 = vpop.f32.mrf.mxu0
      %v446 = vpop.f32.mrf.mxu0
      %447 = vdwg.mxu0
      %v448 = vpack.c.bf16 %v402, %v402
      %v449 = vpack.c.bf16 %v404, %v404
      %v450 = vpack.c.bf16 %v443, %v443
      %v454 = vunpack.c.l.b16 %v448
      %v455 = vunpack.c.l.b16 %v449
      %v456 = vunpack.c.l.b16 %v450
      %v457 = vpack.c.b16 %v455, %v454
      %v458 = vpack.c.b16 %v456, %v456
      %461 = vst [vmem:[#allocation2 + $0x4] sm:$0xff] %v457
      %462 = vst [vmem:[#allocation2 + $0xc] sm:$0xf] %v458
      %v463 = vld [vmem:[#allocation2] sm:$0xff]
      %v464 = vld [vmem:[#allocation2 + $0x8] sm:$0xff]
      %467 = vrot.lane.b32.xlu0 %v463, 19
      %v468 = vpop.permute.xlu0 %467
      %469 = vrot.lane.b32.xlu0 %v464, 19
      %v470 = vpop.permute.xlu0 %469
      %v471 = vrot.slane %v468, 4
      %v472 = vrot.slane %v470, 4
      %vm473 = vcmask 1043456
      %v474 = vsel %vm473, %v471, %v472
      %vm475 = vcmask 154624
      %v476 = vsel %vm475, %v468, %v474
      %v477 = vsel %vm475, %v470, %v472
      %480 = vst [vmem:[#allocation4] sm:$0xff] %v476
      %481 = vst [vmem:[#allocation4 + $0x8] sm:$0xf] %v477
      %v482 = vld [vmem:[#allocation2] sm:$0xff]
      %v483 = vld [vmem:[#allocation2 + $0x8] sm:$0xff]
      %486 = vrot.lane.b32.xlu0 %v482, 18
      %v487 = vpop.permute.xlu0 %486
      %488 = vrot.lane.b32.xlu0 %v483, 18
      %v489 = vpop.permute.xlu0 %488
      %v490 = vrot.slane %v487, 4
      %v491 = vrot.slane %v489, 4
      %v492 = vsel %vm473, %v490, %v491
      %vm493 = vcmask 146432
      %v494 = vsel %vm493, %v487, %v492
      %v495 = vsel %vm493, %v489, %v491
      %498 = vst [vmem:[#allocation4 + $0xc] sm:$0xff] %v494
      %499 = vst [vmem:[#allocation4 + $0x14] sm:$0xf] %v495
      %v500 = vld [vmem:[#allocation2] sm:$0xff]
      %v501 = vld [vmem:[#allocation2 + $0x8] sm:$0xff]
      %504 = vrot.lane.b32.xlu0 %v500, 17
      %v505 = vpop.permute.xlu0 %504
      %506 = vrot.lane.b32.xlu0 %v501, 17
      %v507 = vpop.permute.xlu0 %506
      %v508 = vrot.slane %v505, 4
      %v509 = vrot.slane %v507, 4
      %v510 = vsel %vm473, %v508, %v509
      %vm511 = vcmask 138240
      %v512 = vsel %vm511, %v505, %v510
      %v513 = vsel %vm511, %v507, %v509
      %516 = vst [vmem:[#allocation4 + $0x18] sm:$0xff] %v512
      %517 = vst [vmem:[#allocation4 + $0x20] sm:$0xf] %v513
      %v518 = vld [vmem:[#allocation2] sm:$0xff]
      %v519 = vld [vmem:[#allocation2 + $0x8] sm:$0xff]
      %522 = vrot.lane.b32.xlu0 %v518, 1
      %v523 = vpop.permute.xlu0 %522
      %524 = vrot.lane.b32.xlu0 %v519, 1
      %v525 = vpop.permute.xlu0 %524
      %v526 = vrot.slane %v523, 4
      %v527 = vrot.slane %v525, 4
      %v528 = vsel %vm473, %v526, %v527
      %vm529 = vcmask 7168
      %v530 = vsel %vm529, %v523, %v528
      %v531 = vsel %vm529, %v525, %v527
      %534 = vst [vmem:[#allocation4 + $0x24] sm:$0xff] %v530
      %535 = vst [vmem:[#allocation4 + $0x2c] sm:$0xf] %v531
      %v536 = vld [vmem:[#allocation2 + $0x4] sm:$0xff]
      %v537 = vld [vmem:[#allocation2 + $0xc] sm:$0xf]
      %538 = vst [vmem:[#allocation4 + $0x30] sm:$0xff] %v536
      %539 = vst [vmem:[#allocation4 + $0x38] sm:$0xf] %v537
      %v540 = vld [vmem:[#allocation2 + $0x4] sm:$0xff]
      %v541 = vld [vmem:[#allocation2 + $0xc] sm:$0xff]
      %544 = vrot.lane.b32.xlu0 %v540, 127
      %v545 = vpop.permute.xlu0 %544
      %546 = vrot.lane.b32.xlu0 %v541, 127
      %v547 = vpop.permute.xlu0 %546
      %v548 = vrot.slane %v545, 4
      %v549 = vrot.slane %v547, 4
      %v550 = vsel %vm473, %v548, %v549
      %vm551 = vcmask 1039360
      %v552 = vsel %vm551, %v545, %v550
      %v553 = vsel %vm551, %v547, %v549
      %556 = vst [vmem:[#allocation4 + $0x3c] sm:$0xff] %v552
      %557 = vst [vmem:[#allocation4 + $0x44] sm:$0xf] %v553
      %v558 = vld [vmem:[#allocation2 + $0x4] sm:$0xff]
      %v559 = vld [vmem:[#allocation2 + $0xc] sm:$0xff]
      %562 = vrot.lane.b32.xlu0 %v558, 111
      %v563 = vpop.permute.xlu0 %562
      %564 = vrot.lane.b32.xlu0 %v559, 111
      %v565 = vpop.permute.xlu0 %564
      %v566 = vrot.slane %v563, 4
      %v567 = vrot.slane %v565, 4
      %v568 = vsel %vm473, %v566, %v567
      %vm569 = vcmask 908288
      %v570 = vsel %vm569, %v563, %v568
      %v571 = vsel %vm569, %v565, %v567
      %574 = vst [vmem:[#allocation4 + $0x48] sm:$0xff] %v570
      %575 = vst [vmem:[#allocation4 + $0x50] sm:$0xf] %v571
      %v576 = vld [vmem:[#allocation2 + $0x4] sm:$0xff]
      %v577 = vld [vmem:[#allocation2 + $0xc] sm:$0xff]
      %580 = vrot.lane.b32.xlu0 %v576, 110
      %v581 = vpop.permute.xlu0 %580
      %582 = vrot.lane.b32.xlu0 %v577, 110
      %v583 = vpop.permute.xlu0 %582
      %v584 = vrot.slane %v581, 4
      %v585 = vrot.slane %v583, 4
      %v586 = vsel %vm473, %v584, %v585
      %vm587 = vcmask 900096
      %v588 = vsel %vm587, %v581, %v586
      %v589 = vsel %vm587, %v583, %v585
      %592 = vst [vmem:[#allocation4 + $0x54] sm:$0xff] %v588
      %593 = vst [vmem:[#allocation4 + $0x5c] sm:$0xf] %v589
      %v594 = vld [vmem:[#allocation2 + $0x4] sm:$0xff]
      %v595 = vld [vmem:[#allocation2 + $0xc] sm:$0xff]
      %598 = vrot.lane.b32.xlu0 %v594, 109
      %v599 = vpop.permute.xlu0 %598
      %600 = vrot.lane.b32.xlu0 %v595, 109
      %v601 = vpop.permute.xlu0 %600
      %v602 = vrot.slane %v599, 4
      %v603 = vrot.slane %v601, 4
      %v604 = vsel %vm473, %v602, %v603
      %vm605 = vcmask 891904
      %v606 = vsel %vm605, %v599, %v604
      %v607 = vsel %vm605, %v601, %v603
      %610 = vst [vmem:[#allocation4 + $0x60] sm:$0xff] %v606
      %611 = vst [vmem:[#allocation4 + $0x68] sm:$0xf] %v607
      %v612 = vld [vmem:[%s3] sm:$0xf]
      %v613 = vld [vmem:[%s3 + $0x4] sm:$0xf]
      %v614 = vld [vmem:[%s3 + $0x8] sm:$0xf]
      %v615 = vld [vmem:[%s3 + $0xc] sm:$0xf]
      %v616 = vld [vmem:[#allocation4] sm:$0xff]
      %v617 = vld [vmem:[#allocation4 + $0x8] sm:$0xf]
      %v618 = vld [vmem:[#allocation4 + $0xc] sm:$0xff]
      %v619 = vld [vmem:[#allocation4 + $0x14] sm:$0xf]
      %v620 = vld [vmem:[#allocation4 + $0x18] sm:$0xff]
      %v621 = vld [vmem:[#allocation4 + $0x20] sm:$0xf]
      %v622 = vld [vmem:[#allocation4 + $0x24] sm:$0xff]
      %v623 = vld [vmem:[#allocation4 + $0x2c] sm:$0xf]
      %v624 = vld [vmem:[#allocation4 + $0x30] sm:$0xff]
      %v625 = vld [vmem:[#allocation4 + $0x38] sm:$0xf]
      %v626 = vld [vmem:[#allocation4 + $0x3c] sm:$0xff]
      %v627 = vld [vmem:[#allocation4 + $0x44] sm:$0xf]
      %v628 = vld [vmem:[#allocation4 + $0x48] sm:$0xff]
      %v629 = vld [vmem:[#allocation4 + $0x50] sm:$0xf]
      %v630 = vld [vmem:[#allocation4 + $0x54] sm:$0xff]
      %v631 = vld [vmem:[#allocation4 + $0x5c] sm:$0xf]
      %v632 = vld [vmem:[#allocation4 + $0x60] sm:$0xff]
      %v633 = vld [vmem:[#allocation4 + $0x68] sm:$0xf]
      %v634 = vld [vmem:[%s4] sm:$0xff]
      %v635 = vld [vmem:[%s4 + $0x8] sm:$0xff]
      %v636 = vld [vmem:[%s4 + $0x10] sm:$0xff]
      %v637 = vld [vmem:[%s4 + $0x18] sm:$0xff]
      %639 = vset.pattern.permute.xlu0 0
      %640 = vperm.xlu0 %639, %v634
      %v641 = vpop.permute.xlu0 %640
      %644 = vset.pattern.permute.xlu0 0
      %645 = vperm.xlu0 %644, %v635
      %v646 = vpop.permute.xlu0 %645
      %649 = vset.pattern.permute.xlu0 0
      %650 = vperm.xlu0 %649, %v636
      %v651 = vpop.permute.xlu0 %650
      %654 = vset.pattern.permute.xlu0 0
      %655 = vperm.xlu0 %654, %v637
      %v656 = vpop.permute.xlu0 %655
      %v662 = vunpack.c.l.b16 %v612
      %v663 = vunpack.c.l.b16 %v613
      %v664 = vunpack.c.l.b16 %v614
      %v665 = vunpack.c.l.b16 %v615
      %v666 = vpack.c.b16 %v663, %v662
      %v667 = vpack.c.b16 %v665, %v664
      %v686 = vunpack.c.l.b16 %v616
      %v687 = vunpack.c.h.b16 %v616
      %v688 = vunpack.c.l.b16 %v617
      %v689 = vunpack.c.l.b16 %v618
      %v690 = vunpack.c.h.b16 %v618
      %v691 = vunpack.c.l.b16 %v619
      %v692 = vunpack.c.l.b16 %v620
      %v693 = vunpack.c.h.b16 %v620
      %v694 = vunpack.c.l.b16 %v621
      %v695 = vunpack.c.l.b16 %v622
      %v696 = vunpack.c.h.b16 %v622
      %v697 = vunpack.c.l.b16 %v623
      %v698 = vunpack.c.l.b16 %v624
      %v699 = vunpack.c.h.b16 %v624
      %v700 = vunpack.c.l.b16 %v625
      %v701 = vunpack.c.l.b16 %v626
      %v702 = vunpack.c.h.b16 %v626
      %v703 = vunpack.c.l.b16 %v627
      %v704 = vunpack.c.l.b16 %v628
      %v705 = vunpack.c.h.b16 %v628
      %v706 = vunpack.c.l.b16 %v629
      %v707 = vunpack.c.l.b16 %v630
      %v708 = vunpack.c.h.b16 %v630
      %v709 = vunpack.c.l.b16 %v631
      %v710 = vunpack.c.l.b16 %v632
      %v711 = vunpack.c.h.b16 %v632
      %v712 = vunpack.c.l.b16 %v633
      %v713 = vpack.c.b16 %v689, %v686
      %v714 = vpack.c.b16 %v690, %v687
      %v715 = vpack.c.b16 %v691, %v688
      %v716 = vpack.c.b16 %v695, %v692
      %v717 = vpack.c.b16 %v696, %v693
      %v718 = vpack.c.b16 %v697, %v694
      %v719 = vpack.c.b16 %v701, %v698
      %v720 = vpack.c.b16 %v702, %v699
      %v721 = vpack.c.b16 %v703, %v700
      %v722 = vpack.c.b16 %v707, %v704
      %v723 = vpack.c.b16 %v708, %v705
      %v724 = vpack.c.b16 %v709, %v706
      %v725 = vpack.c.b16 %v710, %v710
      %v726 = vpack.c.b16 %v711, %v711
      %v727 = vpack.c.b16 %v712, %v712
      %vm740 = vcmask 588800
      %v742 = vsel %vm740, %v666, 0
      %v745 = vsel %vm740, %v667, 0
      %vm747 = vcmask 1043456
      %v749 = vsel %vm747, %v725, 0
      %v752 = vsel %vm747, %v726, 0
      %v755 = vsel %vm747, %v727, 0
      %757 = vmatprep.subr.bf16.mxu0 0
      %758 = vmatpush1.bf16.msra.mxu0 0
      %759 = vmatprep.subr.bf16.mxu0 0
      %760 = vmatpush1.bf16.msra.mxu0 0
      %761 = vmatprep.subr.bf16.mxu0 0
      %762 = vmatpush1.bf16.msra.mxu0 0
      %763 = vmatprep.subr.bf16.mxu0 %v752
      %764 = vmatpush1.bf16.msra.mxu0 %v749
      %765 = vmatprep.subr.bf16.mxu0 %v723
      %766 = vmatpush1.bf16.msra.mxu0 %v722
      %767 = vmatprep.subr.bf16.mxu0 %v720
      %768 = vmatpush1.bf16.msra.mxu0 %v719
      %769 = vmatprep.subr.bf16.mxu0 %v717
      %770 = vmatpush1.bf16.msra.mxu0 %v716
      %771 = vmatprep.subr.bf16.mxu0 %v714
      %772 = vmatpush1.bf16.msra.mxu0 %v713
      %773 = vmatprep.subr.bf16.mxu0 0
      %774 = vmatpush2.bf16.msra.mxu0 0
      %775 = vmatprep.subr.bf16.mxu0 0
      %776 = vmatpush2.bf16.msra.mxu0 0
      %777 = vmatprep.subr.bf16.mxu0 0
      %778 = vmatpush2.bf16.msra.mxu0 0
      %779 = vmatprep.subr.bf16.mxu0 0
      %780 = vmatpush2.bf16.msra.mxu0 0
      %781 = vmatprep.subr.bf16.mxu0 0
      %782 = vmatpush2.bf16.msra.mxu0 0
      %783 = vmatprep.subr.bf16.mxu0 0
      %784 = vmatpush2.bf16.msra.mxu0 0
      %785 = vmatprep.subr.bf16.mxu0 0
      %786 = vmatpush2.bf16.msra.mxu0 0
      %787 = vmatprep.subr.bf16.mxu0 0
      %788 = vmatpush2.bf16.msra.mxu0 0
      %789 = vmatprep.mubr.bf16.mxu0 0
      %790 = vmatmul.mubr.bf16.gmra.mxu0 %v742
      %v791 = vpop.f32.mrf.mxu0
      %v792 = vadd.f32 %v641, %v791
      %v793 = vpop.f32.mrf.mxu0
      %v794 = vadd.f32 %v641, %v793
      %v795 = vpop.f32.mrf.mxu0
      %v796 = vadd.f32 %v646, %v795
      %v797 = vpop.f32.mrf.mxu0
      %v798 = vadd.f32 %v646, %v797
      %799 = vmatprep.mubr.bf16.mxu0 0
      %800 = vmatmul.mubr.bf16.gmra.mxu0 %v745
      %v801 = vpop.f32.mrf.mxu0
      %v802 = vadd.f32 %v651, %v801
      %v803 = vpop.f32.mrf.mxu0
      %v804 = vadd.f32 %v651, %v803
      %v805 = vpop.f32.mrf.mxu0
      %v806 = vadd.f32 %v656, %v805
      %v807 = vpop.f32.mrf.mxu0
      %v808 = vadd.f32 %v656, %v807
      %809 = vdwg.mxu0
      %810 = vmatprep.subr.bf16.mxu0 0
      %811 = vmatpush1.bf16.msra.mxu0 0
      %812 = vmatprep.subr.bf16.mxu0 0
      %813 = vmatpush1.bf16.msra.mxu0 0
      %814 = vmatprep.subr.bf16.mxu0 0
      %815 = vmatpush1.bf16.msra.mxu0 0
      %816 = vmatprep.subr.bf16.mxu0 0
      %817 = vmatpush1.bf16.msra.mxu0 %v755
      %818 = vmatprep.subr.bf16.mxu0 0
      %819 = vmatpush1.bf16.msra.mxu0 %v724
      %820 = vmatprep.subr.bf16.mxu0 0
      %821 = vmatpush1.bf16.msra.mxu0 %v721
      %822 = vmatprep.subr.bf16.mxu0 0
      %823 = vmatpush1.bf16.msra.mxu0 %v718
      %824 = vmatprep.subr.bf16.mxu0 0
      %825 = vmatpush1.bf16.msra.mxu0 %v715
      %826 = vmatprep.subr.bf16.mxu0 0
      %827 = vmatpush2.bf16.msra.mxu0 0
      %828 = vmatprep.subr.bf16.mxu0 0
      %829 = vmatpush2.bf16.msra.mxu0 0
      %830 = vmatprep.subr.bf16.mxu0 0
      %831 = vmatpush2.bf16.msra.mxu0 0
      %832 = vmatprep.subr.bf16.mxu0 0
      %833 = vmatpush2.bf16.msra.mxu0 0
      %834 = vmatprep.subr.bf16.mxu0 0
      %835 = vmatpush2.bf16.msra.mxu0 0
      %836 = vmatprep.subr.bf16.mxu0 0
      %837 = vmatpush2.bf16.msra.mxu0 0
      %838 = vmatprep.subr.bf16.mxu0 0
      %839 = vmatpush2.bf16.msra.mxu0 0
      %840 = vmatprep.subr.bf16.mxu0 0
      %841 = vmatpush2.bf16.msra.mxu0 0
      %842 = vmatprep.mubr.bf16.mxu0 0
      %843 = vmatmul.mubr.bf16.gmra.mxu0 %v742
      %v844 = vpop.f32.mrf.mxu0
      %v845 = vadd.f32 %v641, %v844
      %v846 = vpop.f32.mrf.mxu0
      %v847 = vpop.f32.mrf.mxu0
      %v848 = vadd.f32 %v646, %v847
      %v849 = vpop.f32.mrf.mxu0
      %850 = vmatprep.mubr.bf16.mxu0 0
      %851 = vmatmul.mubr.bf16.gmra.mxu0 %v745
      %v852 = vpop.f32.mrf.mxu0
      %v853 = vadd.f32 %v651, %v852
      %v854 = vpop.f32.mrf.mxu0
      %v855 = vpop.f32.mrf.mxu0
      %v856 = vadd.f32 %v656, %v855
      %v857 = vpop.f32.mrf.mxu0
      %858 = vdwg.mxu0
      %v859 = vxor.u32 %v792, 2147483648
      %v860 = vxor.u32 %v794, 2147483648
      %v861 = vxor.u32 %v845, 2147483648
      %v862 = vxor.u32 %v796, 2147483648
      %v863 = vxor.u32 %v798, 2147483648
      %v864 = vxor.u32 %v848, 2147483648
      %v865 = vxor.u32 %v802, 2147483648
      %v866 = vxor.u32 %v804, 2147483648
      %v867 = vxor.u32 %v853, 2147483648
      %v868 = vxor.u32 %v806, 2147483648
      %v869 = vxor.u32 %v808, 2147483648
      %v870 = vxor.u32 %v856, 2147483648
      %v871 = vmul.f32 %v859, 1.442695
      %v872 = vpow.pop %v871
      %v873 = vmul.f32 %v860, 1.442695
      %v874 = vpow.pop %v873
      %v875 = vmul.f32 %v861, 1.442695
      %v876 = vpow.pop %v875
      %v877 = vmul.f32 %v862, 1.442695
      %v878 = vpow.pop %v877
      %v879 = vmul.f32 %v863, 1.442695
      %v880 = vpow.pop %v879
      %v881 = vmul.f32 %v864, 1.442695
      %v882 = vpow.pop %v881
      %v883 = vmul.f32 %v865, 1.442695
      %v884 = vpow.pop %v883
      %v885 = vmul.f32 %v866, 1.442695
      %v886 = vpow.pop %v885
      %v887 = vmul.f32 %v867, 1.442695
      %v888 = vpow.pop %v887
      %v889 = vmul.f32 %v868, 1.442695
      %v890 = vpow.pop %v889
      %v891 = vmul.f32 %v869, 1.442695
      %v892 = vpow.pop %v891
      %v893 = vmul.f32 %v870, 1.442695
      %v894 = vpow.pop %v893
      %v895 = vadd.f32 %v872, 1.0
      %v896 = vadd.f32 %v874, 1.0
      %v897 = vadd.f32 %v876, 1.0
      %v898 = vadd.f32 %v878, 1.0
      %v899 = vadd.f32 %v880, 1.0
      %v900 = vadd.f32 %v882, 1.0
      %v901 = vadd.f32 %v884, 1.0
      %v902 = vadd.f32 %v886, 1.0
      %v903 = vadd.f32 %v888, 1.0
      %v904 = vadd.f32 %v890, 1.0
      %v905 = vadd.f32 %v892, 1.0
      %v906 = vadd.f32 %v894, 1.0
      %v907 = vrcp.pop %v895
      %v908 = vmul.f32 1.0, %v907
      %v909 = vrcp.pop %v896
      %v910 = vmul.f32 1.0, %v909
      %v911 = vrcp.pop %v897
      %v912 = vmul.f32 1.0, %v911
      %v913 = vrcp.pop %v898
      %v914 = vmul.f32 1.0, %v913
      %v915 = vrcp.pop %v899
      %v916 = vmul.f32 1.0, %v915
      %v917 = vrcp.pop %v900
      %v918 = vmul.f32 1.0, %v917
      %v919 = vrcp.pop %v901
      %v920 = vmul.f32 1.0, %v919
      %v921 = vrcp.pop %v902
      %v922 = vmul.f32 1.0, %v921
      %v923 = vrcp.pop %v903
      %v924 = vmul.f32 1.0, %v923
      %v925 = vrcp.pop %v904
      %v926 = vmul.f32 1.0, %v925
      %v927 = vrcp.pop %v905
      %v928 = vmul.f32 1.0, %v927
      %v929 = vrcp.pop %v906
      %v930 = vmul.f32 1.0, %v929
      %v931 = vmul.f32 %v792, %v908
      %v932 = vmul.f32 %v794, %v910
      %v933 = vmul.f32 %v845, %v912
      %v934 = vmul.f32 %v796, %v914
      %v935 = vmul.f32 %v798, %v916
      %v936 = vmul.f32 %v848, %v918
      %v937 = vmul.f32 %v802, %v920
      %v938 = vmul.f32 %v804, %v922
      %v939 = vmul.f32 %v853, %v924
      %v940 = vmul.f32 %v806, %v926
      %v941 = vmul.f32 %v808, %v928
      %v942 = vmul.f32 %v856, %v930
      %v943 = vsel %vm308, 1, 0
      %v944 = vlaneseq
      %v945 = vshrl.u32 %v944, 7
      %v946 = vsub.s32 0, %v945
      %v947 = vrot.slane %v943, %v946
      %v948 = vlaneseq
      %v949 = vshrl.u32 %v948, 7
      %v950 = vsub.s32 1, %v949
      %v951 = vrot.slane %v943, %v950
      %v952 = vlaneseq
      %v953 = vshrl.u32 %v952, 7
      %v954 = vsub.s32 2, %v953
      %v955 = vrot.slane %v943, %v954
      %vm956 = vcmp.eq.s32.totalorder %v947, 1
      %vm957 = vcmp.eq.s32.totalorder %v951, 1
      %vm958 = vcmp.eq.s32.totalorder %v955, 1
      %v959 = vsel %vm956, %v931, 0.0
      %v960 = vsel %vm957, %v932, 0.0
      %v961 = vsel %vm958, %v933, 0.0
      %v962 = vsel %vm956, %v934, 0.0
      %v963 = vsel %vm957, %v935, 0.0
      %v964 = vsel %vm958, %v936, 0.0
      %v965 = vsel %vm956, %v937, 0.0
      %v966 = vsel %vm957, %v938, 0.0
      %v967 = vsel %vm958, %v939, 0.0
      %v968 = vsel %vm956, %v940, 0.0
      %v969 = vsel %vm957, %v941, 0.0
      %v970 = vsel %vm958, %v942, 0.0
      %v971 = vpack.c.bf16 %v962, %v959
      %v972 = vpack.c.bf16 %v963, %v960
      %v973 = vpack.c.bf16 %v964, %v961
      %v974 = vpack.c.bf16 %v968, %v965
      %v975 = vpack.c.bf16 %v969, %v966
      %v976 = vpack.c.bf16 %v970, %v967
      %v983 = vunpack.c.l.b16 %v971
      %v984 = vunpack.c.l.b16 %v972
      %v985 = vunpack.c.l.b16 %v973
      %v986 = vunpack.c.h.b16 %v971
      %v987 = vunpack.c.h.b16 %v972
      %v988 = vunpack.c.h.b16 %v973
      %v989 = vunpack.c.l.b16 %v974
      %v990 = vunpack.c.l.b16 %v975
      %v991 = vunpack.c.l.b16 %v976
      %v992 = vunpack.c.h.b16 %v974
      %v993 = vunpack.c.h.b16 %v975
      %v994 = vunpack.c.h.b16 %v976
      %v995 = vpack.c.b16 %v984, %v983
      %v996 = vpack.c.b16 %v985, %v985
      %v997 = vpack.c.b16 %v987, %v986
      %v998 = vpack.c.b16 %v988, %v988
      %v999 = vpack.c.b16 %v990, %v989
      %v1000 = vpack.c.b16 %v991, %v991
      %v1001 = vpack.c.b16 %v993, %v992
      %v1002 = vpack.c.b16 %v994, %v994
      %1011 = vst [vmem:[#allocation3 + $0x4] sm:$0xff] %v995
      %1012 = vst [vmem:[#allocation3 + $0xc] sm:$0xf] %v996
      %1013 = vst [vmem:[#allocation3 + $0x18] sm:$0xff] %v997
      %1014 = vst [vmem:[#allocation3 + $0x20] sm:$0xf] %v998
      %1015 = vst [vmem:[#allocation3 + $0x2c] sm:$0xff] %v999
      %1016 = vst [vmem:[#allocation3 + $0x34] sm:$0xf] %v1000
      %1017 = vst [vmem:[#allocation3 + $0x40] sm:$0xff] %v1001
      %1018 = vst [vmem:[#allocation3 + $0x48] sm:$0xf] %v1002
      %v1019 = vld [vmem:[#allocation3] sm:$0xff]
      %v1020 = vld [vmem:[#allocation3 + $0x8] sm:$0xff]
      %v1021 = vld [vmem:[#allocation3 + $0x14] sm:$0xff]
      %v1022 = vld [vmem:[#allocation3 + $0x1c] sm:$0xff]
      %v1023 = vld [vmem:[#allocation3 + $0x28] sm:$0xff]
      %v1024 = vld [vmem:[#allocation3 + $0x30] sm:$0xff]
      %v1025 = vld [vmem:[#allocation3 + $0x3c] sm:$0xff]
      %v1026 = vld [vmem:[#allocation3 + $0x44] sm:$0xff]
      %1035 = vrot.lane.b32.xlu0 %v1019, 19
      %v1036 = vpop.permute.xlu0 %1035
      %1037 = vrot.lane.b32.xlu0 %v1020, 19
      %v1038 = vpop.permute.xlu0 %1037
      %1039 = vrot.lane.b32.xlu0 %v1021, 19
      %v1040 = vpop.permute.xlu0 %1039
      %1041 = vrot.lane.b32.xlu0 %v1022, 19
      %v1042 = vpop.permute.xlu0 %1041
      %1043 = vrot.lane.b32.xlu0 %v1023, 19
      %v1044 = vpop.permute.xlu0 %1043
      %1045 = vrot.lane.b32.xlu0 %v1024, 19
      %v1046 = vpop.permute.xlu0 %1045
      %1047 = vrot.lane.b32.xlu0 %v1025, 19
      %v1048 = vpop.permute.xlu0 %1047
      %1049 = vrot.lane.b32.xlu0 %v1026, 19
      %v1050 = vpop.permute.xlu0 %1049
      %v1051 = vrot.slane %v1036, 4
      %v1052 = vrot.slane %v1038, 4
      %v1053 = vrot.slane %v1040, 4
      %v1054 = vrot.slane %v1042, 4
      %v1055 = vrot.slane %v1044, 4
      %v1056 = vrot.slane %v1046, 4
      %v1057 = vrot.slane %v1048, 4
      %v1058 = vrot.slane %v1050, 4
      %v1059 = vsel %vm473, %v1051, %v1052
      %v1060 = vsel %vm475, %v1036, %v1059
      %v1061 = vsel %vm475, %v1038, %v1052
      %v1062 = vsel %vm473, %v1053, %v1054
      %v1063 = vsel %vm475, %v1040, %v1062
      %v1064 = vsel %vm475, %v1042, %v1054
      %v1065 = vsel %vm473, %v1055, %v1056
      %v1066 = vsel %vm475, %v1044, %v1065
      %v1067 = vsel %vm475, %v1046, %v1056
      %v1068 = vsel %vm473, %v1057, %v1058
      %v1069 = vsel %vm475, %v1048, %v1068
      %v1070 = vsel %vm475, %v1050, %v1058
      %1079 = vst [vmem:[#allocation5] sm:$0xff] %v1060
      %1080 = vst [vmem:[#allocation5 + $0x8] sm:$0xf] %v1061
      %1081 = vst [vmem:[#allocation5 + $0xc] sm:$0xff] %v1063
      %1082 = vst [vmem:[#allocation5 + $0x14] sm:$0xf] %v1064
      %1083 = vst [vmem:[#allocation5 + $0x18] sm:$0xff] %v1066
      %1084 = vst [vmem:[#allocation5 + $0x20] sm:$0xf] %v1067
      %1085 = vst [vmem:[#allocation5 + $0x24] sm:$0xff] %v1069
      %1086 = vst [vmem:[#allocation5 + $0x2c] sm:$0xf] %v1070
      %v1087 = vld [vmem:[#allocation3] sm:$0xff]
      %v1088 = vld [vmem:[#allocation3 + $0x8] sm:$0xff]
      %v1089 = vld [vmem:[#allocation3 + $0x14] sm:$0xff]
      %v1090 = vld [vmem:[#allocation3 + $0x1c] sm:$0xff]
      %v1091 = vld [vmem:[#allocation3 + $0x28] sm:$0xff]
      %v1092 = vld [vmem:[#allocation3 + $0x30] sm:$0xff]
      %v1093 = vld [vmem:[#allocation3 + $0x3c] sm:$0xff]
      %v1094 = vld [vmem:[#allocation3 + $0x44] sm:$0xff]
      %1103 = vrot.lane.b32.xlu0 %v1087, 18
      %v1104 = vpop.permute.xlu0 %1103
      %1105 = vrot.lane.b32.xlu0 %v1088, 18
      %v1106 = vpop.permute.xlu0 %1105
      %1107 = vrot.lane.b32.xlu0 %v1089, 18
      %v1108 = vpop.permute.xlu0 %1107
      %1109 = vrot.lane.b32.xlu0 %v1090, 18
      %v1110 = vpop.permute.xlu0 %1109
      %1111 = vrot.lane.b32.xlu0 %v1091, 18
      %v1112 = vpop.permute.xlu0 %1111
      %1113 = vrot.lane.b32.xlu0 %v1092, 18
      %v1114 = vpop.permute.xlu0 %1113
      %1115 = vrot.lane.b32.xlu0 %v1093, 18
      %v1116 = vpop.permute.xlu0 %1115
      %1117 = vrot.lane.b32.xlu0 %v1094, 18
      %v1118 = vpop.permute.xlu0 %1117
      %v1119 = vrot.slane %v1104, 4
      %v1120 = vrot.slane %v1106, 4
      %v1121 = vrot.slane %v1108, 4
      %v1122 = vrot.slane %v1110, 4
      %v1123 = vrot.slane %v1112, 4
      %v1124 = vrot.slane %v1114, 4
      %v1125 = vrot.slane %v1116, 4
      %v1126 = vrot.slane %v1118, 4
      %v1127 = vsel %vm473, %v1119, %v1120
      %v1128 = vsel %vm493, %v1104, %v1127
      %v1129 = vsel %vm493, %v1106, %v1120
      %v1130 = vsel %vm473, %v1121, %v1122
      %v1131 = vsel %vm493, %v1108, %v1130
      %v1132 = vsel %vm493, %v1110, %v1122
      %v1133 = vsel %vm473, %v1123, %v1124
      %v1134 = vsel %vm493, %v1112, %v1133
      %v1135 = vsel %vm493, %v1114, %v1124
      %v1136 = vsel %vm473, %v1125, %v1126
      %v1137 = vsel %vm493, %v1116, %v1136
      %v1138 = vsel %vm493, %v1118, %v1126
      %1147 = vst [vmem:[#allocation5 + $0x30] sm:$0xff] %v1128
      %1148 = vst [vmem:[#allocation5 + $0x38] sm:$0xf] %v1129
      %1149 = vst [vmem:[#allocation5 + $0x3c] sm:$0xff] %v1131
      %1150 = vst [vmem:[#allocation5 + $0x44] sm:$0xf] %v1132
      %1151 = vst [vmem:[#allocation5 + $0x48] sm:$0xff] %v1134
      %1152 = vst [vmem:[#allocation5 + $0x50] sm:$0xf] %v1135
      %1153 = vst [vmem:[#allocation5 + $0x54] sm:$0xff] %v1137
      %1154 = vst [vmem:[#allocation5 + $0x5c] sm:$0xf] %v1138
      %v1155 = vld [vmem:[#allocation3] sm:$0xff]
      %v1156 = vld [vmem:[#allocation3 + $0x8] sm:$0xff]
      %v1157 = vld [vmem:[#allocation3 + $0x14] sm:$0xff]
      %v1158 = vld [vmem:[#allocation3 + $0x1c] sm:$0xff]
      %v1159 = vld [vmem:[#allocation3 + $0x28] sm:$0xff]
      %v1160 = vld [vmem:[#allocation3 + $0x30] sm:$0xff]
      %v1161 = vld [vmem:[#allocation3 + $0x3c] sm:$0xff]
      %v1162 = vld [vmem:[#allocation3 + $0x44] sm:$0xff]
      %1171 = vrot.lane.b32.xlu0 %v1155, 17
      %v1172 = vpop.permute.xlu0 %1171
      %1173 = vrot.lane.b32.xlu0 %v1156, 17
      %v1174 = vpop.permute.xlu0 %1173
      %1175 = vrot.lane.b32.xlu0 %v1157, 17
      %v1176 = vpop.permute.xlu0 %1175
      %1177 = vrot.lane.b32.xlu0 %v1158, 17
      %v1178 = vpop.permute.xlu0 %1177
      %1179 = vrot.lane.b32.xlu0 %v1159, 17
      %v1180 = vpop.permute.xlu0 %1179
      %1181 = vrot.lane.b32.xlu0 %v1160, 17
      %v1182 = vpop.permute.xlu0 %1181
      %1183 = vrot.lane.b32.xlu0 %v1161, 17
      %v1184 = vpop.permute.xlu0 %1183
      %1185 = vrot.lane.b32.xlu0 %v1162, 17
      %v1186 = vpop.permute.xlu0 %1185
      %v1187 = vrot.slane %v1172, 4
      %v1188 = vrot.slane %v1174, 4
      %v1189 = vrot.slane %v1176, 4
      %v1190 = vrot.slane %v1178, 4
      %v1191 = vrot.slane %v1180, 4
      %v1192 = vrot.slane %v1182, 4
      %v1193 = vrot.slane %v1184, 4
      %v1194 = vrot.slane %v1186, 4
      %v1195 = vsel %vm473, %v1187, %v1188
      %v1196 = vsel %vm511, %v1172, %v1195
      %v1197 = vsel %vm511, %v1174, %v1188
      %v1198 = vsel %vm473, %v1189, %v1190
      %v1199 = vsel %vm511, %v1176, %v1198
      %v1200 = vsel %vm511, %v1178, %v1190
      %v1201 = vsel %vm473, %v1191, %v1192
      %v1202 = vsel %vm511, %v1180, %v1201
      %v1203 = vsel %vm511, %v1182, %v1192
      %v1204 = vsel %vm473, %v1193, %v1194
      %v1205 = vsel %vm511, %v1184, %v1204
      %v1206 = vsel %vm511, %v1186, %v1194
      %1215 = vst [vmem:[#allocation5 + $0x60] sm:$0xff] %v1196
      %1216 = vst [vmem:[#allocation5 + $0x68] sm:$0xf] %v1197
      %1217 = vst [vmem:[#allocation5 + $0x6c] sm:$0xff] %v1199
      %1218 = vst [vmem:[#allocation5 + $0x74] sm:$0xf] %v1200
      %1219 = vst [vmem:[#allocation5 + $0x78] sm:$0xff] %v1202
      %1220 = vst [vmem:[#allocation5 + $0x80] sm:$0xf] %v1203
      %1221 = vst [vmem:[#allocation5 + $0x84] sm:$0xff] %v1205
      %1222 = vst [vmem:[#allocation5 + $0x8c] sm:$0xf] %v1206
      %v1223 = vld [vmem:[#allocation3] sm:$0xff]
      %v1224 = vld [vmem:[#allocation3 + $0x8] sm:$0xff]
      %v1225 = vld [vmem:[#allocation3 + $0x14] sm:$0xff]
      %v1226 = vld [vmem:[#allocation3 + $0x1c] sm:$0xff]
      %v1227 = vld [vmem:[#allocation3 + $0x28] sm:$0xff]
      %v1228 = vld [vmem:[#allocation3 + $0x30] sm:$0xff]
      %v1229 = vld [vmem:[#allocation3 + $0x3c] sm:$0xff]
      %v1230 = vld [vmem:[#allocation3 + $0x44] sm:$0xff]
      %1239 = vrot.lane.b32.xlu0 %v1223, 1
      %v1240 = vpop.permute.xlu0 %1239
      %1241 = vrot.lane.b32.xlu0 %v1224, 1
      %v1242 = vpop.permute.xlu0 %1241
      %1243 = vrot.lane.b32.xlu0 %v1225, 1
      %v1244 = vpop.permute.xlu0 %1243
      %1245 = vrot.lane.b32.xlu0 %v1226, 1
      %v1246 = vpop.permute.xlu0 %1245
      %1247 = vrot.lane.b32.xlu0 %v1227, 1
      %v1248 = vpop.permute.xlu0 %1247
      %1249 = vrot.lane.b32.xlu0 %v1228, 1
      %v1250 = vpop.permute.xlu0 %1249
      %1251 = vrot.lane.b32.xlu0 %v1229, 1
      %v1252 = vpop.permute.xlu0 %1251
      %1253 = vrot.lane.b32.xlu0 %v1230, 1
      %v1254 = vpop.permute.xlu0 %1253
      %v1255 = vrot.slane %v1240, 4
      %v1256 = vrot.slane %v1242, 4
      %v1257 = vrot.slane %v1244, 4
      %v1258 = vrot.slane %v1246, 4
      %v1259 = vrot.slane %v1248, 4
      %v1260 = vrot.slane %v1250, 4
      %v1261 = vrot.slane %v1252, 4
      %v1262 = vrot.slane %v1254, 4
      %v1263 = vsel %vm473, %v1255, %v1256
      %v1264 = vsel %vm529, %v1240, %v1263
      %v1265 = vsel %vm529, %v1242, %v1256
      %v1266 = vsel %vm473, %v1257, %v1258
      %v1267 = vsel %vm529, %v1244, %v1266
      %v1268 = vsel %vm529, %v1246, %v1258
      %v1269 = vsel %vm473, %v1259, %v1260
      %v1270 = vsel %vm529, %v1248, %v1269
      %v1271 = vsel %vm529, %v1250, %v1260
      %v1272 = vsel %vm473, %v1261, %v1262
      %v1273 = vsel %vm529, %v1252, %v1272
      %v1274 = vsel %vm529, %v1254, %v1262
      %1283 = vst [vmem:[#allocation5 + $0x90] sm:$0xff] %v1264
      %1284 = vst [vmem:[#allocation5 + $0x98] sm:$0xf] %v1265
      %1285 = vst [vmem:[#allocation5 + $0x9c] sm:$0xff] %v1267
      %1286 = vst [vmem:[#allocation5 + $0xa4] sm:$0xf] %v1268
      %1287 = vst [vmem:[#allocation5 + $0xa8] sm:$0xff] %v1270
      %1288 = vst [vmem:[#allocation5 + $0xb0] sm:$0xf] %v1271
      %1289 = vst [vmem:[#allocation5 + $0xb4] sm:$0xff] %v1273
      %1290 = vst [vmem:[#allocation5 + $0xbc] sm:$0xf] %v1274
      %v1291 = vld [vmem:[#allocation3 + $0x4] sm:$0xff]
      %v1292 = vld [vmem:[#allocation3 + $0xc] sm:$0xf]
      %v1293 = vld [vmem:[#allocation3 + $0x18] sm:$0xff]
      %v1294 = vld [vmem:[#allocation3 + $0x20] sm:$0xf]
      %v1295 = vld [vmem:[#allocation3 + $0x2c] sm:$0xff]
      %v1296 = vld [vmem:[#allocation3 + $0x34] sm:$0xf]
      %v1297 = vld [vmem:[#allocation3 + $0x40] sm:$0xff]
      %v1298 = vld [vmem:[#allocation3 + $0x48] sm:$0xf]
      %1299 = vst [vmem:[#allocation5 + $0xc0] sm:$0xff] %v1291
      %1300 = vst [vmem:[#allocation5 + $0xc8] sm:$0xf] %v1292
      %1301 = vst [vmem:[#allocation5 + $0xcc] sm:$0xff] %v1293
      %1302 = vst [vmem:[#allocation5 + $0xd4] sm:$0xf] %v1294
      %1303 = vst [vmem:[#allocation5 + $0xd8] sm:$0xff] %v1295
      %1304 = vst [vmem:[#allocation5 + $0xe0] sm:$0xf] %v1296
      %1305 = vst [vmem:[#allocation5 + $0xe4] sm:$0xff] %v1297
      %1306 = vst [vmem:[#allocation5 + $0xec] sm:$0xf] %v1298
      %v1307 = vld [vmem:[#allocation3 + $0x4] sm:$0xff]
      %v1308 = vld [vmem:[#allocation3 + $0xc] sm:$0xff]
      %v1309 = vld [vmem:[#allocation3 + $0x18] sm:$0xff]
      %v1310 = vld [vmem:[#allocation3 + $0x20] sm:$0xff]
      %v1311 = vld [vmem:[#allocation3 + $0x2c] sm:$0xff]
      %v1312 = vld [vmem:[#allocation3 + $0x34] sm:$0xff]
      %v1313 = vld [vmem:[#allocation3 + $0x40] sm:$0xff]
      %v1314 = vld [vmem:[#allocation3 + $0x48] sm:$0xff]
      %1323 = vrot.lane.b32.xlu0 %v1307, 127
      %v1324 = vpop.permute.xlu0 %1323
      %1325 = vrot.lane.b32.xlu0 %v1308, 127
      %v1326 = vpop.permute.xlu0 %1325
      %1327 = vrot.lane.b32.xlu0 %v1309, 127
      %v1328 = vpop.permute.xlu0 %1327
      %1329 = vrot.lane.b32.xlu0 %v1310, 127
      %v1330 = vpop.permute.xlu0 %1329
      %1331 = vrot.lane.b32.xlu0 %v1311, 127
      %v1332 = vpop.permute.xlu0 %1331
      %1333 = vrot.lane.b32.xlu0 %v1312, 127
      %v1334 = vpop.permute.xlu0 %1333
      %1335 = vrot.lane.b32.xlu0 %v1313, 127
      %v1336 = vpop.permute.xlu0 %1335
      %1337 = vrot.lane.b32.xlu0 %v1314, 127
      %v1338 = vpop.permute.xlu0 %1337
      %v1339 = vrot.slane %v1324, 4
      %v1340 = vrot.slane %v1326, 4
      %v1341 = vrot.slane %v1328, 4
      %v1342 = vrot.slane %v1330, 4
      %v1343 = vrot.slane %v1332, 4
      %v1344 = vrot.slane %v1334, 4
      %v1345 = vrot.slane %v1336, 4
      %v1346 = vrot.slane %v1338, 4
      %v1347 = vsel %vm473, %v1339, %v1340
      %v1348 = vsel %vm551, %v1324, %v1347
      %v1349 = vsel %vm551, %v1326, %v1340
      %v1350 = vsel %vm473, %v1341, %v1342
      %v1351 = vsel %vm551, %v1328, %v1350
      %v1352 = vsel %vm551, %v1330, %v1342
      %v1353 = vsel %vm473, %v1343, %v1344
      %v1354 = vsel %vm551, %v1332, %v1353
      %v1355 = vsel %vm551, %v1334, %v1344
      %v1356 = vsel %vm473, %v1345, %v1346
      %v1357 = vsel %vm551, %v1336, %v1356
      %v1358 = vsel %vm551, %v1338, %v1346
      %1367 = vst [vmem:[#allocation5 + $0xf0] sm:$0xff] %v1348
      %1368 = vst [vmem:[#allocation5 + $0xf8] sm:$0xf] %v1349
      %1369 = vst [vmem:[#allocation5 + $0xfc] sm:$0xff] %v1351
      %1370 = vst [vmem:[#allocation5 + $0x104] sm:$0xf] %v1352
      %1371 = vst [vmem:[#allocation5 + $0x108] sm:$0xff] %v1354
      %1372 = vst [vmem:[#allocation5 + $0x110] sm:$0xf] %v1355
      %1373 = vst [vmem:[#allocation5 + $0x114] sm:$0xff] %v1357
      %1374 = vst [vmem:[#allocation5 + $0x11c] sm:$0xf] %v1358
      %v1375 = vld [vmem:[#allocation3 + $0x4] sm:$0xff]
      %v1376 = vld [vmem:[#allocation3 + $0xc] sm:$0xff]
      %v1377 = vld [vmem:[#allocation3 + $0x18] sm:$0xff]
      %v1378 = vld [vmem:[#allocation3 + $0x20] sm:$0xff]
      %v1379 = vld [vmem:[#allocation3 + $0x2c] sm:$0xff]
      %v1380 = vld [vmem:[#allocation3 + $0x34] sm:$0xff]
      %v1381 = vld [vmem:[#allocation3 + $0x40] sm:$0xff]
      %v1382 = vld [vmem:[#allocation3 + $0x48] sm:$0xff]
      %1391 = vrot.lane.b32.xlu0 %v1375, 111
      %v1392 = vpop.permute.xlu0 %1391
      %1393 = vrot.lane.b32.xlu0 %v1376, 111
      %v1394 = vpop.permute.xlu0 %1393
      %1395 = vrot.lane.b32.xlu0 %v1377, 111
      %v1396 = vpop.permute.xlu0 %1395
      %1397 = vrot.lane.b32.xlu0 %v1378, 111
      %v1398 = vpop.permute.xlu0 %1397
      %1399 = vrot.lane.b32.xlu0 %v1379, 111
      %v1400 = vpop.permute.xlu0 %1399
      %1401 = vrot.lane.b32.xlu0 %v1380, 111
      %v1402 = vpop.permute.xlu0 %1401
      %1403 = vrot.lane.b32.xlu0 %v1381, 111
      %v1404 = vpop.permute.xlu0 %1403
      %1405 = vrot.lane.b32.xlu0 %v1382, 111
      %v1406 = vpop.permute.xlu0 %1405
      %v1407 = vrot.slane %v1392, 4
      %v1408 = vrot.slane %v1394, 4
      %v1409 = vrot.slane %v1396, 4
      %v1410 = vrot.slane %v1398, 4
      %v1411 = vrot.slane %v1400, 4
      %v1412 = vrot.slane %v1402, 4
      %v1413 = vrot.slane %v1404, 4
      %v1414 = vrot.slane %v1406, 4
      %v1415 = vsel %vm473, %v1407, %v1408
      %v1416 = vsel %vm569, %v1392, %v1415
      %v1417 = vsel %vm569, %v1394, %v1408
      %v1418 = vsel %vm473, %v1409, %v1410
      %v1419 = vsel %vm569, %v1396, %v1418
      %v1420 = vsel %vm569, %v1398, %v1410
      %v1421 = vsel %vm473, %v1411, %v1412
      %v1422 = vsel %vm569, %v1400, %v1421
      %v1423 = vsel %vm569, %v1402, %v1412
      %v1424 = vsel %vm473, %v1413, %v1414
      %v1425 = vsel %vm569, %v1404, %v1424
      %v1426 = vsel %vm569, %v1406, %v1414
      %1435 = vst [vmem:[#allocation5 + $0x120] sm:$0xff] %v1416
      %1436 = vst [vmem:[#allocation5 + $0x128] sm:$0xf] %v1417
      %1437 = vst [vmem:[#allocation5 + $0x12c] sm:$0xff] %v1419
      %1438 = vst [vmem:[#allocation5 + $0x134] sm:$0xf] %v1420
      %1439 = vst [vmem:[#allocation5 + $0x138] sm:$0xff] %v1422
      %1440 = vst [vmem:[#allocation5 + $0x140] sm:$0xf] %v1423
      %1441 = vst [vmem:[#allocation5 + $0x144] sm:$0xff] %v1425
      %1442 = vst [vmem:[#allocation5 + $0x14c] sm:$0xf] %v1426
      %v1443 = vld [vmem:[#allocation3 + $0x4] sm:$0xff]
      %v1444 = vld [vmem:[#allocation3 + $0xc] sm:$0xff]
      %v1445 = vld [vmem:[#allocation3 + $0x18] sm:$0xff]
      %v1446 = vld [vmem:[#allocation3 + $0x20] sm:$0xff]
      %v1447 = vld [vmem:[#allocation3 + $0x2c] sm:$0xff]
      %v1448 = vld [vmem:[#allocation3 + $0x34] sm:$0xff]
      %v1449 = vld [vmem:[#allocation3 + $0x40] sm:$0xff]
      %v1450 = vld [vmem:[#allocation3 + $0x48] sm:$0xff]
      %1459 = vrot.lane.b32.xlu0 %v1443, 110
      %v1460 = vpop.permute.xlu0 %1459
      %1461 = vrot.lane.b32.xlu0 %v1444, 110
      %v1462 = vpop.permute.xlu0 %1461
      %1463 = vrot.lane.b32.xlu0 %v1445, 110
      %v1464 = vpop.permute.xlu0 %1463
      %1465 = vrot.lane.b32.xlu0 %v1446, 110
      %v1466 = vpop.permute.xlu0 %1465
      %1467 = vrot.lane.b32.xlu0 %v1447, 110
      %v1468 = vpop.permute.xlu0 %1467
      %1469 = vrot.lane.b32.xlu0 %v1448, 110
      %v1470 = vpop.permute.xlu0 %1469
      %1471 = vrot.lane.b32.xlu0 %v1449, 110
      %v1472 = vpop.permute.xlu0 %1471
      %1473 = vrot.lane.b32.xlu0 %v1450, 110
      %v1474 = vpop.permute.xlu0 %1473
      %v1475 = vrot.slane %v1460, 4
      %v1476 = vrot.slane %v1462, 4
      %v1477 = vrot.slane %v1464, 4
      %v1478 = vrot.slane %v1466, 4
      %v1479 = vrot.slane %v1468, 4
      %v1480 = vrot.slane %v1470, 4
      %v1481 = vrot.slane %v1472, 4
      %v1482 = vrot.slane %v1474, 4
      %v1483 = vsel %vm473, %v1475, %v1476
      %v1484 = vsel %vm587, %v1460, %v1483
      %v1485 = vsel %vm587, %v1462, %v1476
      %v1486 = vsel %vm473, %v1477, %v1478
      %v1487 = vsel %vm587, %v1464, %v1486
      %v1488 = vsel %vm587, %v1466, %v1478
      %v1489 = vsel %vm473, %v1479, %v1480
      %v1490 = vsel %vm587, %v1468, %v1489
      %v1491 = vsel %vm587, %v1470, %v1480
      %v1492 = vsel %vm473, %v1481, %v1482
      %v1493 = vsel %vm587, %v1472, %v1492
      %v1494 = vsel %vm587, %v1474, %v1482
      %1503 = vst [vmem:[#allocation5 + $0x150] sm:$0xff] %v1484
      %1504 = vst [vmem:[#allocation5 + $0x158] sm:$0xf] %v1485
      %1505 = vst [vmem:[#allocation5 + $0x15c] sm:$0xff] %v1487
      %1506 = vst [vmem:[#allocation5 + $0x164] sm:$0xf] %v1488
      %1507 = vst [vmem:[#allocation5 + $0x168] sm:$0xff] %v1490
      %1508 = vst [vmem:[#allocation5 + $0x170] sm:$0xf] %v1491
      %1509 = vst [vmem:[#allocation5 + $0x174] sm:$0xff] %v1493
      %1510 = vst [vmem:[#allocation5 + $0x17c] sm:$0xf] %v1494
      %v1511 = vld [vmem:[#allocation3 + $0x4] sm:$0xff]
      %v1512 = vld [vmem:[#allocation3 + $0xc] sm:$0xff]
      %v1513 = vld [vmem:[#allocation3 + $0x18] sm:$0xff]
      %v1514 = vld [vmem:[#allocation3 + $0x20] sm:$0xff]
      %v1515 = vld [vmem:[#allocation3 + $0x2c] sm:$0xff]
      %v1516 = vld [vmem:[#allocation3 + $0x34] sm:$0xff]
      %v1517 = vld [vmem:[#allocation3 + $0x40] sm:$0xff]
      %v1518 = vld [vmem:[#allocation3 + $0x48] sm:$0xff]
      %1527 = vrot.lane.b32.xlu0 %v1511, 109
      %v1528 = vpop.permute.xlu0 %1527
      %1529 = vrot.lane.b32.xlu0 %v1512, 109
      %v1530 = vpop.permute.xlu0 %1529
      %1531 = vrot.lane.b32.xlu0 %v1513, 109
      %v1532 = vpop.permute.xlu0 %1531
      %1533 = vrot.lane.b32.xlu0 %v1514, 109
      %v1534 = vpop.permute.xlu0 %1533
      %1535 = vrot.lane.b32.xlu0 %v1515, 109
      %v1536 = vpop.permute.xlu0 %1535
      %1537 = vrot.lane.b32.xlu0 %v1516, 109
      %v1538 = vpop.permute.xlu0 %1537
      %1539 = vrot.lane.b32.xlu0 %v1517, 109
      %v1540 = vpop.permute.xlu0 %1539
      %1541 = vrot.lane.b32.xlu0 %v1518, 109
      %v1542 = vpop.permute.xlu0 %1541
      %v1543 = vrot.slane %v1528, 4
      %v1544 = vrot.slane %v1530, 4
      %v1545 = vrot.slane %v1532, 4
      %v1546 = vrot.slane %v1534, 4
      %v1547 = vrot.slane %v1536, 4
      %v1548 = vrot.slane %v1538, 4
      %v1549 = vrot.slane %v1540, 4
      %v1550 = vrot.slane %v1542, 4
      %v1551 = vsel %vm473, %v1543, %v1544
      %v1552 = vsel %vm605, %v1528, %v1551
      %v1553 = vsel %vm605, %v1530, %v1544
      %v1554 = vsel %vm473, %v1545, %v1546
      %v1555 = vsel %vm605, %v1532, %v1554
      %v1556 = vsel %vm605, %v1534, %v1546
      %v1557 = vsel %vm473, %v1547, %v1548
      %v1558 = vsel %vm605, %v1536, %v1557
      %v1559 = vsel %vm605, %v1538, %v1548
      %v1560 = vsel %vm473, %v1549, %v1550
      %v1561 = vsel %vm605, %v1540, %v1560
      %v1562 = vsel %vm605, %v1542, %v1550
      %1571 = vst [vmem:[#allocation5 + $0x180] sm:$0xff] %v1552
      %1572 = vst [vmem:[#allocation5 + $0x188] sm:$0xf] %v1553
      %1573 = vst [vmem:[#allocation5 + $0x18c] sm:$0xff] %v1555
      %1574 = vst [vmem:[#allocation5 + $0x194] sm:$0xf] %v1556
      %1575 = vst [vmem:[#allocation5 + $0x198] sm:$0xff] %v1558
      %1576 = vst [vmem:[#allocation5 + $0x1a0] sm:$0xf] %v1559
      %1577 = vst [vmem:[#allocation5 + $0x1a4] sm:$0xff] %v1561
      %1578 = vst [vmem:[#allocation5 + $0x1ac] sm:$0xf] %v1562
      %v1579 = vld [vmem:[%s5] sm:$0xff]
      %v1580 = vld [vmem:[%s5 + $0x8] sm:$0xf]
      %v1581 = vld [vmem:[#allocation5] sm:$0xff]
      %v1582 = vld [vmem:[#allocation5 + $0x8] sm:$0xf]
      %v1583 = vld [vmem:[#allocation5 + $0xc] sm:$0xff]
      %v1584 = vld [vmem:[#allocation5 + $0x14] sm:$0xf]
      %v1585 = vld [vmem:[#allocation5 + $0x18] sm:$0xff]
      %v1586 = vld [vmem:[#allocation5 + $0x20] sm:$0xf]
      %v1587 = vld [vmem:[#allocation5 + $0x24] sm:$0xff]
      %v1588 = vld [vmem:[#allocation5 + $0x2c] sm:$0xf]
      %v1589 = vld [vmem:[#allocation5 + $0x30] sm:$0xff]
      %v1590 = vld [vmem:[#allocation5 + $0x38] sm:$0xf]
      %v1591 = vld [vmem:[#allocation5 + $0x3c] sm:$0xff]
      %v1592 = vld [vmem:[#allocation5 + $0x44] sm:$0xf]
      %v1593 = vld [vmem:[#allocation5 + $0x48] sm:$0xff]
      %v1594 = vld [vmem:[#allocation5 + $0x50] sm:$0xf]
      %v1595 = vld [vmem:[#allocation5 + $0x54] sm:$0xff]
      %v1596 = vld [vmem:[#allocation5 + $0x5c] sm:$0xf]
      %v1597 = vld [vmem:[#allocation5 + $0x60] sm:$0xff]
      %v1598 = vld [vmem:[#allocation5 + $0x68] sm:$0xf]
      %v1599 = vld [vmem:[#allocation5 + $0x6c] sm:$0xff]
      %v1600 = vld [vmem:[#allocation5 + $0x74] sm:$0xf]
      %v1601 = vld [vmem:[#allocation5 + $0x78] sm:$0xff]
      %v1602 = vld [vmem:[#allocation5 + $0x80] sm:$0xf]
      %v1603 = vld [vmem:[#allocation5 + $0x84] sm:$0xff]
      %v1604 = vld [vmem:[#allocation5 + $0x8c] sm:$0xf]
      %v1605 = vld [vmem:[#allocation5 + $0x90] sm:$0xff]
      %v1606 = vld [vmem:[#allocation5 + $0x98] sm:$0xf]
      %v1607 = vld [vmem:[#allocation5 + $0x9c] sm:$0xff]
      %v1608 = vld [vmem:[#allocation5 + $0xa4] sm:$0xf]
      %v1609 = vld [vmem:[#allocation5 + $0xa8] sm:$0xff]
      %v1610 = vld [vmem:[#allocation5 + $0xb0] sm:$0xf]
      %v1611 = vld [vmem:[#allocation5 + $0xb4] sm:$0xff]
      %v1612 = vld [vmem:[#allocation5 + $0xbc] sm:$0xf]
      %v1613 = vld [vmem:[#allocation5 + $0xc0] sm:$0xff]
      %v1614 = vld [vmem:[#allocation5 + $0xc8] sm:$0xf]
      %v1615 = vld [vmem:[#allocation5 + $0xcc] sm:$0xff]
      %v1616 = vld [vmem:[#allocation5 + $0xd4] sm:$0xf]
      %v1617 = vld [vmem:[#allocation5 + $0xd8] sm:$0xff]
      %v1618 = vld [vmem:[#allocation5 + $0xe0] sm:$0xf]
      %v1619 = vld [vmem:[#allocation5 + $0xe4] sm:$0xff]
      %v1620 = vld [vmem:[#allocation5 + $0xec] sm:$0xf]
      %v1621 = vld [vmem:[#allocation5 + $0xf0] sm:$0xff]
      %v1622 = vld [vmem:[#allocation5 + $0xf8] sm:$0xf]
      %v1623 = vld [vmem:[#allocation5 + $0xfc] sm:$0xff]
      %v1624 = vld [vmem:[#allocation5 + $0x104] sm:$0xf]
      %v1625 = vld [vmem:[#allocation5 + $0x108] sm:$0xff]
      %v1626 = vld [vmem:[#allocation5 + $0x110] sm:$0xf]
      %v1627 = vld [vmem:[#allocation5 + $0x114] sm:$0xff]
      %v1628 = vld [vmem:[#allocation5 + $0x11c] sm:$0xf]
      %v1629 = vld [vmem:[#allocation5 + $0x120] sm:$0xff]
      %v1630 = vld [vmem:[#allocation5 + $0x128] sm:$0xf]
      %v1631 = vld [vmem:[#allocation5 + $0x12c] sm:$0xff]
      %v1632 = vld [vmem:[#allocation5 + $0x134] sm:$0xf]
      %v1633 = vld [vmem:[#allocation5 + $0x138] sm:$0xff]
      %v1634 = vld [vmem:[#allocation5 + $0x140] sm:$0xf]
      %v1635 = vld [vmem:[#allocation5 + $0x144] sm:$0xff]
      %v1636 = vld [vmem:[#allocation5 + $0x14c] sm:$0xf]
      %v1637 = vld [vmem:[#allocation5 + $0x150] sm:$0xff]
      %v1638 = vld [vmem:[#allocation5 + $0x158] sm:$0xf]
      %v1639 = vld [vmem:[#allocation5 + $0x15c] sm:$0xff]
      %v1640 = vld [vmem:[#allocation5 + $0x164] sm:$0xf]
      %v1641 = vld [vmem:[#allocation5 + $0x168] sm:$0xff]
      %v1642 = vld [vmem:[#allocation5 + $0x170] sm:$0xf]
      %v1643 = vld [vmem:[#allocation5 + $0x174] sm:$0xff]
      %v1644 = vld [vmem:[#allocation5 + $0x17c] sm:$0xf]
      %v1645 = vld [vmem:[#allocation5 + $0x180] sm:$0xff]
      %v1646 = vld [vmem:[#allocation5 + $0x188] sm:$0xf]
      %v1647 = vld [vmem:[#allocation5 + $0x18c] sm:$0xff]
      %v1648 = vld [vmem:[#allocation5 + $0x194] sm:$0xf]
      %v1649 = vld [vmem:[#allocation5 + $0x198] sm:$0xff]
      %v1650 = vld [vmem:[#allocation5 + $0x1a0] sm:$0xf]
      %v1651 = vld [vmem:[#allocation5 + $0x1a4] sm:$0xff]
      %v1652 = vld [vmem:[#allocation5 + $0x1ac] sm:$0xf]
      %v1653 = vld [vmem:[%s6] sm:$0xff]
      %1655 = vset.pattern.permute.xlu0 0
      %1656 = vperm.xlu0 %1655, %v1653
      %v1657 = vpop.permute.xlu0 %1656
      %v1661 = vunpack.c.l.b16 %v1579
      %v1662 = vunpack.c.h.b16 %v1579
      %v1663 = vunpack.c.l.b16 %v1580
      %v1664 = vpack.c.b16 %v1661, %v1661
      %v1665 = vpack.c.b16 %v1662, %v1662
      %v1666 = vpack.c.b16 %v1663, %v1663
      %v1741 = vunpack.c.l.b16 %v1581
      %v1742 = vunpack.c.h.b16 %v1581
      %v1743 = vunpack.c.l.b16 %v1582
      %v1744 = vunpack.c.l.b16 %v1583
      %v1745 = vunpack.c.h.b16 %v1583
      %v1746 = vunpack.c.l.b16 %v1584
      %v1747 = vunpack.c.l.b16 %v1585
      %v1748 = vunpack.c.h.b16 %v1585
      %v1749 = vunpack.c.l.b16 %v1586
      %v1750 = vunpack.c.l.b16 %v1587
      %v1751 = vunpack.c.h.b16 %v1587
      %v1752 = vunpack.c.l.b16 %v1588
      %v1753 = vunpack.c.l.b16 %v1589
      %v1754 = vunpack.c.h.b16 %v1589
      %v1755 = vunpack.c.l.b16 %v1590
      %v1756 = vunpack.c.l.b16 %v1591
      %v1757 = vunpack.c.h.b16 %v1591
      %v1758 = vunpack.c.l.b16 %v1592
      %v1759 = vunpack.c.l.b16 %v1593
      %v1760 = vunpack.c.h.b16 %v1593
      %v1761 = vunpack.c.l.b16 %v1594
      %v1762 = vunpack.c.l.b16 %v1595
      %v1763 = vunpack.c.h.b16 %v1595
      %v1764 = vunpack.c.l.b16 %v1596
      %v1765 = vunpack.c.l.b16 %v1597
      %v1766 = vunpack.c.h.b16 %v1597
      %v1767 = vunpack.c.l.b16 %v1598
      %v1768 = vunpack.c.l.b16 %v1599
      %v1769 = vunpack.c.h.b16 %v1599
      %v1770 = vunpack.c.l.b16 %v1600
      %v1771 = vunpack.c.l.b16 %v1601
      %v1772 = vunpack.c.h.b16 %v1601
      %v1773 = vunpack.c.l.b16 %v1602
      %v1774 = vunpack.c.l.b16 %v1603
      %v1775 = vunpack.c.h.b16 %v1603
      %v1776 = vunpack.c.l.b16 %v1604
      %v1777 = vunpack.c.l.b16 %v1605
      %v1778 = vunpack.c.h.b16 %v1605
      %v1779 = vunpack.c.l.b16 %v1606
      %v1780 = vunpack.c.l.b16 %v1607
      %v1781 = vunpack.c.h.b16 %v1607
      %v1782 = vunpack.c.l.b16 %v1608
      %v1783 = vunpack.c.l.b16 %v1609
      %v1784 = vunpack.c.h.b16 %v1609
      %v1785 = vunpack.c.l.b16 %v1610
      %v1786 = vunpack.c.l.b16 %v1611
      %v1787 = vunpack.c.h.b16 %v1611
      %v1788 = vunpack.c.l.b16 %v1612
      %v1789 = vunpack.c.l.b16 %v1613
      %v1790 = vunpack.c.h.b16 %v1613
      %v1791 = vunpack.c.l.b16 %v1614
      %v1792 = vunpack.c.l.b16 %v1615
      %v1793 = vunpack.c.h.b16 %v1615
      %v1794 = vunpack.c.l.b16 %v1616
      %v1795 = vunpack.c.l.b16 %v1617
      %v1796 = vunpack.c.h.b16 %v1617
      %v1797 = vunpack.c.l.b16 %v1618
      %v1798 = vunpack.c.l.b16 %v1619
      %v1799 = vunpack.c.h.b16 %v1619
      %v1800 = vunpack.c.l.b16 %v1620
      %v1801 = vunpack.c.l.b16 %v1621
      %v1802 = vunpack.c.h.b16 %v1621
      %v1803 = vunpack.c.l.b16 %v1622
      %v1804 = vunpack.c.l.b16 %v1623
      %v1805 = vunpack.c.h.b16 %v1623
      %v1806 = vunpack.c.l.b16 %v1624
      %v1807 = vunpack.c.l.b16 %v1625
      %v1808 = vunpack.c.h.b16 %v1625
      %v1809 = vunpack.c.l.b16 %v1626
      %v1810 = vunpack.c.l.b16 %v1627
      %v1811 = vunpack.c.h.b16 %v1627
      %v1812 = vunpack.c.l.b16 %v1628
      %v1813 = vunpack.c.l.b16 %v1629
      %v1814 = vunpack.c.h.b16 %v1629
      %v1815 = vunpack.c.l.b16 %v1630
      %v1816 = vunpack.c.l.b16 %v1631
      %v1817 = vunpack.c.h.b16 %v1631
      %v1818 = vunpack.c.l.b16 %v1632
      %v1819 = vunpack.c.l.b16 %v1633
      %v1820 = vunpack.c.h.b16 %v1633
      %v1821 = vunpack.c.l.b16 %v1634
      %v1822 = vunpack.c.l.b16 %v1635
      %v1823 = vunpack.c.h.b16 %v1635
      %v1824 = vunpack.c.l.b16 %v1636
      %v1825 = vunpack.c.l.b16 %v1637
      %v1826 = vunpack.c.h.b16 %v1637
      %v1827 = vunpack.c.l.b16 %v1638
      %v1828 = vunpack.c.l.b16 %v1639
      %v1829 = vunpack.c.h.b16 %v1639
      %v1830 = vunpack.c.l.b16 %v1640
      %v1831 = vunpack.c.l.b16 %v1641
      %v1832 = vunpack.c.h.b16 %v1641
      %v1833 = vunpack.c.l.b16 %v1642
      %v1834 = vunpack.c.l.b16 %v1643
      %v1835 = vunpack.c.h.b16 %v1643
      %v1836 = vunpack.c.l.b16 %v1644
      %v1837 = vunpack.c.l.b16 %v1645
      %v1838 = vunpack.c.h.b16 %v1645
      %v1839 = vunpack.c.l.b16 %v1646
      %v1840 = vunpack.c.l.b16 %v1647
      %v1841 = vunpack.c.h.b16 %v1647
      %v1842 = vunpack.c.l.b16 %v1648
      %v1843 = vunpack.c.l.b16 %v1649
      %v1844 = vunpack.c.h.b16 %v1649
      %v1845 = vunpack.c.l.b16 %v1650
      %v1846 = vunpack.c.l.b16 %v1651
      %v1847 = vunpack.c.h.b16 %v1651
      %v1848 = vunpack.c.l.b16 %v1652
      %v1849 = vpack.c.b16 %v1744, %v1741
      %v1850 = vpack.c.b16 %v1745, %v1742
      %v1851 = vpack.c.b16 %v1746, %v1743
      %v1852 = vpack.c.b16 %v1750, %v1747
      %v1853 = vpack.c.b16 %v1751, %v1748
      %v1854 = vpack.c.b16 %v1752, %v1749
      %v1855 = vpack.c.b16 %v1756, %v1753
      %v1856 = vpack.c.b16 %v1757, %v1754
      %v1857 = vpack.c.b16 %v1758, %v1755
      %v1858 = vpack.c.b16 %v1762, %v1759
      %v1859 = vpack.c.b16 %v1763, %v1760
      %v1860 = vpack.c.b16 %v1764, %v1761
      %v1861 = vpack.c.b16 %v1768, %v1765
      %v1862 = vpack.c.b16 %v1769, %v1766
      %v1863 = vpack.c.b16 %v1770, %v1767
      %v1864 = vpack.c.b16 %v1774, %v1771
      %v1865 = vpack.c.b16 %v1775, %v1772
      %v1866 = vpack.c.b16 %v1776, %v1773
      %v1867 = vpack.c.b16 %v1780, %v1777
      %v1868 = vpack.c.b16 %v1781, %v1778
      %v1869 = vpack.c.b16 %v1782, %v1779
      %v1870 = vpack.c.b16 %v1786, %v1783
      %v1871 = vpack.c.b16 %v1787, %v1784
      %v1872 = vpack.c.b16 %v1788, %v1785
      %v1873 = vpack.c.b16 %v1792, %v1789
      %v1874 = vpack.c.b16 %v1793, %v1790
      %v1875 = vpack.c.b16 %v1794, %v1791
      %v1876 = vpack.c.b16 %v1798, %v1795
      %v1877 = vpack.c.b16 %v1799, %v1796
      %v1878 = vpack.c.b16 %v1800, %v1797
      %v1879 = vpack.c.b16 %v1804, %v1801
      %v1880 = vpack.c.b16 %v1805, %v1802
      %v1881 = vpack.c.b16 %v1806, %v1803
      %v1882 = vpack.c.b16 %v1810, %v1807
      %v1883 = vpack.c.b16 %v1811, %v1808
      %v1884 = vpack.c.b16 %v1812, %v1809
      %v1885 = vpack.c.b16 %v1816, %v1813
      %v1886 = vpack.c.b16 %v1817, %v1814
      %v1887 = vpack.c.b16 %v1818, %v1815
      %v1888 = vpack.c.b16 %v1822, %v1819
      %v1889 = vpack.c.b16 %v1823, %v1820
      %v1890 = vpack.c.b16 %v1824, %v1821
      %v1891 = vpack.c.b16 %v1828, %v1825
      %v1892 = vpack.c.b16 %v1829, %v1826
      %v1893 = vpack.c.b16 %v1830, %v1827
      %v1894 = vpack.c.b16 %v1834, %v1831
      %v1895 = vpack.c.b16 %v1835, %v1832
      %v1896 = vpack.c.b16 %v1836, %v1833
      %v1897 = vpack.c.b16 %v1840, %v1837
      %v1898 = vpack.c.b16 %v1841, %v1838
      %v1899 = vpack.c.b16 %v1842, %v1839
      %v1900 = vpack.c.b16 %v1846, %v1843
      %v1901 = vpack.c.b16 %v1847, %v1844
      %v1902 = vpack.c.b16 %v1848, %v1845
      %vm1957 = vcmask 261120
      %v1959 = vsel %vm1957, %v1666, 0
      %1961 = vmatprep.subr.bf16.mxu0 %v1871
      %1962 = vmatpush1.bf16.msra.mxu0 %v1870
      %1963 = vmatprep.subr.bf16.mxu0 %v1868
      %1964 = vmatpush1.bf16.msra.mxu0 %v1867
      %1965 = vmatprep.subr.bf16.mxu0 %v1865
      %1966 = vmatpush1.bf16.msra.mxu0 %v1864
      %1967 = vmatprep.subr.bf16.mxu0 %v1862
      %1968 = vmatpush1.bf16.msra.mxu0 %v1861
      %1969 = vmatprep.subr.bf16.mxu0 %v1859
      %1970 = vmatpush1.bf16.msra.mxu0 %v1858
      %1971 = vmatprep.subr.bf16.mxu0 %v1856
      %1972 = vmatpush1.bf16.msra.mxu0 %v1855
      %1973 = vmatprep.subr.bf16.mxu0 %v1853
      %1974 = vmatpush1.bf16.msra.mxu0 %v1852
      %1975 = vmatprep.subr.bf16.mxu0 %v1850
      %1976 = vmatpush1.bf16.msra.mxu0 %v1849
      %1977 = vmatprep.subr.bf16.mxu0 %v1895
      %1978 = vmatpush2.bf16.msra.mxu0 %v1894
      %1979 = vmatprep.subr.bf16.mxu0 %v1892
      %1980 = vmatpush2.bf16.msra.mxu0 %v1891
      %1981 = vmatprep.subr.bf16.mxu0 %v1889
      %1982 = vmatpush2.bf16.msra.mxu0 %v1888
      %1983 = vmatprep.subr.bf16.mxu0 %v1886
      %1984 = vmatpush2.bf16.msra.mxu0 %v1885
      %1985 = vmatprep.subr.bf16.mxu0 %v1883
      %1986 = vmatpush2.bf16.msra.mxu0 %v1882
      %1987 = vmatprep.subr.bf16.mxu0 %v1880
      %1988 = vmatpush2.bf16.msra.mxu0 %v1879
      %1989 = vmatprep.subr.bf16.mxu0 %v1877
      %1990 = vmatpush2.bf16.msra.mxu0 %v1876
      %1991 = vmatprep.subr.bf16.mxu0 %v1874
      %1992 = vmatpush2.bf16.msra.mxu0 %v1873
      %1993 = vmatprep.mubr.bf16.mxu0 %v1665
      %1994 = vmatmul.mubr.bf16.gmra.mxu0 %v1664
      %v1995 = vpop.f32.mrf.mxu0
      %v1996 = vadd.f32 %v1657, %v1995
      %v1997 = vpop.f32.mrf.mxu0
      %v1998 = vadd.f32 %v1657, %v1997
      %v1999 = vpop.f32.mrf.mxu0
      %v2000 = vpop.f32.mrf.mxu0
      %2001 = vdwg.mxu0
      %2002 = vmatprep.subr.bf16.mxu0 0
      %2003 = vmatpush1.bf16.msra.mxu0 0
      %2004 = vmatprep.subr.bf16.mxu0 0
      %2005 = vmatpush1.bf16.msra.mxu0 0
      %2006 = vmatprep.subr.bf16.mxu0 0
      %2007 = vmatpush1.bf16.msra.mxu0 0
      %2008 = vmatprep.subr.bf16.mxu0 0
      %2009 = vmatpush1.bf16.msra.mxu0 0
      %2010 = vmatprep.subr.bf16.mxu0 0
      %2011 = vmatpush1.bf16.msra.mxu0 0
      %2012 = vmatprep.subr.bf16.mxu0 0
      %2013 = vmatpush1.bf16.msra.mxu0 0
      %2014 = vmatprep.subr.bf16.mxu0 %v1901
      %2015 = vmatpush1.bf16.msra.mxu0 %v1900
      %2016 = vmatprep.subr.bf16.mxu0 %v1898
      %2017 = vmatpush1.bf16.msra.mxu0 %v1897
      %2018 = vmatprep.subr.bf16.mxu0 0
      %2019 = vmatpush2.bf16.msra.mxu0 0
      %2020 = vmatprep.subr.bf16.mxu0 0
      %2021 = vmatpush2.bf16.msra.mxu0 0
      %2022 = vmatprep.subr.bf16.mxu0 0
      %2023 = vmatpush2.bf16.msra.mxu0 0
      %2024 = vmatprep.subr.bf16.mxu0 0
      %2025 = vmatpush2.bf16.msra.mxu0 0
      %2026 = vmatprep.subr.bf16.mxu0 0
      %2027 = vmatpush2.bf16.msra.mxu0 0
      %2028 = vmatprep.subr.bf16.mxu0 0
      %2029 = vmatpush2.bf16.msra.mxu0 0
      %2030 = vmatprep.subr.bf16.mxu0 0
      %2031 = vmatpush2.bf16.msra.mxu0 0
      %2032 = vmatprep.subr.bf16.mxu0 0
      %2033 = vmatpush2.bf16.msra.mxu0 0
      %2034 = vmatprep.mubr.bf16.mxu0 0
      %2035 = vmatmul.mubr.bf16.gmra.mxu0 %v1959
      %v2036 = vpop.f32.mrf.mxu0
      %v2037 = vadd.f32 %v1996, %v2036
      %v2038 = vpop.f32.mrf.mxu0
      %v2039 = vadd.f32 %v1998, %v2038
      %v2040 = vpop.f32.mrf.mxu0
      %v2041 = vpop.f32.mrf.mxu0
      %2042 = vdwg.mxu0
      %2043 = vmatprep.subr.bf16.mxu0 0
      %2044 = vmatpush1.bf16.msra.mxu0 %v1872
      %2045 = vmatprep.subr.bf16.mxu0 0
      %2046 = vmatpush1.bf16.msra.mxu0 %v1869
      %2047 = vmatprep.subr.bf16.mxu0 0
      %2048 = vmatpush1.bf16.msra.mxu0 %v1866
      %2049 = vmatprep.subr.bf16.mxu0 0
      %2050 = vmatpush1.bf16.msra.mxu0 %v1863
      %2051 = vmatprep.subr.bf16.mxu0 0
      %2052 = vmatpush1.bf16.msra.mxu0 %v1860
      %2053 = vmatprep.subr.bf16.mxu0 0
      %2054 = vmatpush1.bf16.msra.mxu0 %v1857
      %2055 = vmatprep.subr.bf16.mxu0 0
      %2056 = vmatpush1.bf16.msra.mxu0 %v1854
      %2057 = vmatprep.subr.bf16.mxu0 0
      %2058 = vmatpush1.bf16.msra.mxu0 %v1851
      %2059 = vmatprep.subr.bf16.mxu0 0
      %2060 = vmatpush2.bf16.msra.mxu0 %v1896
      %2061 = vmatprep.subr.bf16.mxu0 0
      %2062 = vmatpush2.bf16.msra.mxu0 %v1893
      %2063 = vmatprep.subr.bf16.mxu0 0
      %2064 = vmatpush2.bf16.msra.mxu0 %v1890
      %2065 = vmatprep.subr.bf16.mxu0 0
      %2066 = vmatpush2.bf16.msra.mxu0 %v1887
      %2067 = vmatprep.subr.bf16.mxu0 0
      %2068 = vmatpush2.bf16.msra.mxu0 %v1884
      %2069 = vmatprep.subr.bf16.mxu0 0
      %2070 = vmatpush2.bf16.msra.mxu0 %v1881
      %2071 = vmatprep.subr.bf16.mxu0 0
      %2072 = vmatpush2.bf16.msra.mxu0 %v1878
      %2073 = vmatprep.subr.bf16.mxu0 0
      %2074 = vmatpush2.bf16.msra.mxu0 %v1875
      %2075 = vmatprep.mubr.bf16.mxu0 %v1665
      %2076 = vmatmul.mubr.bf16.gmra.mxu0 %v1664
      %v2077 = vpop.f32.mrf.mxu0
      %v2078 = vadd.f32 %v1657, %v2077
      %v2079 = vpop.f32.mrf.mxu0
      %v2080 = vpop.f32.mrf.mxu0
      %v2081 = vpop.f32.mrf.mxu0
      %2082 = vdwg.mxu0
      %2083 = vmatprep.subr.bf16.mxu0 0
      %2084 = vmatpush1.bf16.msra.mxu0 0
      %2085 = vmatprep.subr.bf16.mxu0 0
      %2086 = vmatpush1.bf16.msra.mxu0 0
      %2087 = vmatprep.subr.bf16.mxu0 0
      %2088 = vmatpush1.bf16.msra.mxu0 0
      %2089 = vmatprep.subr.bf16.mxu0 0
      %2090 = vmatpush1.bf16.msra.mxu0 0
      %2091 = vmatprep.subr.bf16.mxu0 0
      %2092 = vmatpush1.bf16.msra.mxu0 0
      %2093 = vmatprep.subr.bf16.mxu0 0
      %2094 = vmatpush1.bf16.msra.mxu0 0
      %2095 = vmatprep.subr.bf16.mxu0 0
      %2096 = vmatpush1.bf16.msra.mxu0 %v1902
      %2097 = vmatprep.subr.bf16.mxu0 0
      %2098 = vmatpush1.bf16.msra.mxu0 %v1899
      %2099 = vmatprep.subr.bf16.mxu0 0
      %2100 = vmatpush2.bf16.msra.mxu0 0
      %2101 = vmatprep.subr.bf16.mxu0 0
      %2102 = vmatpush2.bf16.msra.mxu0 0
      %2103 = vmatprep.subr.bf16.mxu0 0
      %2104 = vmatpush2.bf16.msra.mxu0 0
      %2105 = vmatprep.subr.bf16.mxu0 0
      %2106 = vmatpush2.bf16.msra.mxu0 0
      %2107 = vmatprep.subr.bf16.mxu0 0
      %2108 = vmatpush2.bf16.msra.mxu0 0
      %2109 = vmatprep.subr.bf16.mxu0 0
      %2110 = vmatpush2.bf16.msra.mxu0 0
      %2111 = vmatprep.subr.bf16.mxu0 0
      %2112 = vmatpush2.bf16.msra.mxu0 0
      %2113 = vmatprep.subr.bf16.mxu0 0
      %2114 = vmatpush2.bf16.msra.mxu0 0
      %2115 = vmatprep.mubr.bf16.mxu0 0
      %2116 = vmatmul.mubr.bf16.gmra.mxu0 %v1959
      %v2117 = vpop.f32.mrf.mxu0
      %v2118 = vadd.f32 %v2078, %v2117
      %v2119 = vpop.f32.mrf.mxu0
      %v2120 = vpop.f32.mrf.mxu0
      %v2121 = vpop.f32.mrf.mxu0
      %2122 = vdwg.mxu0
      %2123 = vst [vmem:[%s305] sm:$0xff] %v2037
      %2124 = vst [vmem:[%s305 + $0x8] sm:$0xff] %v2039
      %2125 = vst [vmem:[%s305 + $0x10] sm:$0xff] %v2118
      %p2126 = scmp.lt.s32.totalorder %s19, 1
      %s2127 = scalar_select %p2126, %s19, 1
      %s2128 = smul.addr %s2127, 3
      %s2129 = smul.addr %s2128, 8
      %s2130 = scalar_lea.vmem %s8, %s2129
      // Predicated region
      $region53: #{vd_forward.1} parent=51 // pred_check
        %p2131 = pneg %p210
      $region54: #{vd_forward.1} parent=51 // pred_check_branch
        %2133 = sbr.rel (%p2131) target = $region56
      $region55: #{vd_forward.1} parent=51 // pred_region
        _
      $region56: #{vd_forward.1} parent=51 // pred_fallthru
        _
    $region52: #{vd_forward.1} parent=5 // pred_fallthru
      _
    %p2134 = scmp.le.s32.totalorder 2, %s14
    // Predicated region
    $region57: #{vd_forward.1} parent=5 // pred_check
      %p2135 = pneg %p2134
    $region58: #{vd_forward.1} parent=5 // pred_check_branch
      %2137 = sbr.rel (%p2135) target = $region60
    $region59: #{vd_forward.1} parent=5 // pred_region
      %s2138 = ssub.s32 %s14, 2
      // Predicated region
      $region61: #{vd_forward.1} parent=59 // pred_check
        %p2139 = pneg %p216
      $region62: #{vd_forward.1} parent=59 // pred_check_branch
        %2141 = sbr.rel (%p2139) target = $region64
      $region63: #{vd_forward.1} parent=59 // pred_region
        %p2142 = scmp.lt.s32.totalorder %s20, 1
        %s2143 = scalar_select %p2142, %s20, 1
        %s2144 = smul.addr %s2143, 3
        %s2145 = smul.addr %s2144, 8
        %s2146 = scalar_lea.vmem %s8, %s2145
      $region64: #{vd_forward.1} parent=59 // pred_fallthru
        _
    $region60: #{vd_forward.1} parent=5 // pred_fallthru
      _
  $region6: #{vd_forward.1} parent=0 // loop_footer
    %s18 = sadd.s32 1, %s14
  $region7: #{vd_forward.1} parent=0 // loop_footer_branch
    %13 = sbr.rel target = $region3
  $region8: #{vd_forward.1} parent=0 // loop_exit
    _

</llo_original>
